<compile_context>
chip_gen: v7x
topology: tpu7x:2x2x1
jax: 0.10.0
libtpu: 0.0.40
codegen_flags: <defaults>
</compile_context>

<pallas_src>
import functools
import math

import jax
import jax.numpy as jnp
from jax.experimental import pallas as pl
from jax.experimental.pallas import tpu as pltpu


def _sigmoid_of_neg(d, *, approx):
    """sigmoid(-d), computed with exp(-|d|) so the exp never overflows in f32."""
    e = jnp.exp(-jnp.abs(d))
    r = pl.reciprocal(1.0 + e, approx=approx)
    return jnp.where(d > 0, e * r, r)


def _abstractor_order_kernel(
    xy_ref,                                           # (2TB, D_in) bf16: x rows, then y rows
    w1_ref, b1_ref, w2_ref, b2_ref, w3_ref, b3_ref,   # embedder MLP (bf16 W, f32 b)
    m_ref,                                            # (E, E) bf16 bilinear (Wq/sqrt(dk)) @ Wk^T
    c_ref, v0_ref, v1_ref,                            # (1, H) f32 symbol/head fold constants
    wft_ref, bf_ref,                                  # final layer: Wf^T (1, H) bf16, bf (1,1) f32
    out_ref,                                          # (1, TB) f32
    *, block_b,
):
    f32 = jnp.float32
    bf16 = jnp.bfloat16
    tb = block_b

    # Embedder MLP, run once on the stacked (x; y) rows.
    xy = xy_ref[...]                                                        # (2TB, D_in) bf16
    h = jnp.dot(xy, w1_ref[...], preferred_element_type=f32) + b1_ref[...]
    h = jnp.maximum(h, 0.0)
    h = jnp.dot(h.astype(bf16), w2_ref[...], preferred_element_type=f32) + b2_ref[...]
    h = jnp.maximum(h, 0.0)
    e = jnp.dot(h.astype(bf16), w3_ref[...], preferred_element_type=f32) + b3_ref[...]  # (2TB, E)

    # Bilinear attention scores:  s_ij = e_i M e_j^T,  M = (Wq/sqrt(dk)) Wk^T.
    # a_xy = softmax([s_xx, s_xy])[1] = sigmoid(-(e_x M (e_x - e_y)^T)), similarly a_yy.
    t = jnp.dot(e.astype(bf16), m_ref[...], preferred_element_type=f32)     # (2TB, E)
    ed = e[:tb] - e[tb:]                                                    # (TB, E) f32
    d_x = jnp.sum(t[:tb] * ed, axis=-1, keepdims=True)                      # (TB, 1)
    d_y = jnp.sum(t[tb:] * ed, axis=-1, keepdims=True)                      # (TB, 1)
    a_xy = _sigmoid_of_neg(d_x, approx=True)
    a_yy = _sigmoid_of_neg(d_y, approx=True)

    # Symbols folded through hidden_dense offline:  hh = c + a_xy*v0 + a_yy*v1.
    hh = c_ref[...] + a_xy * v0_ref[...] + a_yy * v1_ref[...]               # (TB, H)
    hh = jnp.maximum(hh, 0.0)

    # Final dense(1) computed transposed (Wf^T @ h^T) so the store is lane-dense.
    logit = jax.lax.dot_general(
        wft_ref[...], hh.astype(bf16),
        dimension_numbers=(((1,), (1,)), ((), ())),
        preferred_element_type=f32) + bf_ref[...]                           # (1, TB)
    out_ref[...] = _sigmoid_of_neg(-logit, approx=False)                    # sigmoid(logit)


def prepare_params(raw_params, *, rel_dim):
    """One-time weight transforms: bilinear Q/K fold, symbols-through-head fold,
    cast MXU operands to bf16 (biases / fold constants stay f32)."""
    (w1, b1, w2, b2, w3, b3, wq, wk, sym, wh, bh, wf, bf) = raw_params
    bf16 = jnp.bfloat16
    scale = 1.0 / math.sqrt(float(rel_dim))

    m = (wq * scale) @ wk.T                           # (E, E)

    s = sym.shape[1]
    s0, s1 = sym[0:1, :], sym[1:2, :]
    wh0, wh1 = wh[:s, :], wh[s:, :]
    c = bh + s0 @ wh0 + s0 @ wh1                      # (1, H)
    v0 = (s1 - s0) @ wh0                              # (1, H)
    v1 = (s1 - s0) @ wh1                              # (1, H)

    return (w1.astype(bf16), b1, w2.astype(bf16), b2, w3.astype(bf16), b3,
            m.astype(bf16), c, v0, v1,
            wf.T.astype(bf16), bf)


def choose_block_b(batch, *, max_block=2048, min_block=128):
    """Large tiles (amortize per-step overhead, fill the MXU M dim) while keeping an
    even number of tiles >= 2 so v7x's two TensorCores both get work under
    dimension_semantics=("parallel",).  On single-TC v5e/v6e callers may instead pass
    block_b = padded B to minimize the serial grid."""
    half = -(-batch // 2)
    blk = -(-half // min_block) * min_block
    return max(min_block, min(max_block, blk))


def abstractor_order_forward(prepared, x, y, *, block_b=None):
    B, in_dim = x.shape
    if block_b is None:
        block_b = choose_block_b(B)
    num_tiles = pl.cdiv(B, block_b)
    b_pad = num_tiles * block_b
    if b_pad != B:
        x = jnp.pad(x, ((0, b_pad - B), (0, 0)))
        y = jnp.pad(y, ((0, b_pad - B), (0, 0)))

    # Wrapper-side stack + bf16 cast: tile i's x-rows and y-rows are adjacent, so the
    # kernel gets one (2*block_b, in_dim) bf16 block per grid step.
    xy = jnp.stack(
        [x.reshape(num_tiles, block_b, in_dim),
         y.reshape(num_tiles, block_b, in_dim)], axis=1,
    ).reshape(num_tiles * 2 * block_b, in_dim).astype(jnp.bfloat16)

    kernel = functools.partial(_abstractor_order_kernel, block_b=block_b)

    xy_spec = pl.BlockSpec((2 * block_b, in_dim), lambda i: (i, 0))
    # Constant index maps -> Mosaic keeps weights resident, no re-DMA across steps.
    weight_specs = [pl.BlockSpec(p.shape, lambda i, nd=p.ndim: (0,) * nd)
                    for p in prepared]

    out_row = pl.pallas_call(
        kernel,
        out_shape=jax.ShapeDtypeStruct((1, b_pad), jnp.float32),
        grid=(num_tiles,),
        in_specs=[xy_spec] + weight_specs,
        out_specs=pl.BlockSpec((1, block_b), lambda i: (0, i)),
        compiler_params=pltpu.CompilerParams(
            dimension_semantics=("parallel",)),
    )(xy, *prepared)
    return out_row[:, :B].T            # (B, 1)


def reference_forward(raw_params, x, y, *, rel_dim):
    (w1, b1, w2, b2, w3, b3, wq, wk, sym, wh, bh, wf, bf) = raw_params

    def embed(v):
        h = jnp.maximum(v @ w1 + b1, 0.0)
        h = jnp.maximum(h @ w2 + b2, 0.0)
        return h @ w3 + b3

    ex, ey = embed(x), embed(y)
    seq = jnp.stack([ex, ey], axis=1)                      # (B, 2, E)
    q = seq @ wq
    k = seq @ wk
    scores = jnp.einsum("bqd,bkd->bqk", q, k) / math.sqrt(float(rel_dim))
    a = jax.nn.softmax(scores, axis=-1)                    # (B, 2, 2)
    out = jnp.einsum("bqk,kd->bqd", a, sym)                # (B, 2, S)
    flat = out.reshape(out.shape[0], -1)
    h = jnp.maximum(flat @ wh + bh, 0.0)
    return jax.nn.sigmoid(h @ wf + bf)


def init_params(key, input_dim, hidden, object_dim, rel_dim, symbol_dim):
    ks = jax.random.split(key, 13)
    n = lambda k, shp: (0.1 * jax.random.normal(k, shp)).astype(jnp.float32)
    w1 = n(ks[0], (input_dim, hidden));   b1 = n(ks[1], (1, hidden))
    w2 = n(ks[2], (hidden, hidden));      b2 = n(ks[3], (1, hidden))
    w3 = n(ks[4], (hidden, object_dim));  b3 = n(ks[5], (1, object_dim))
    wq = n(ks[6], (object_dim, rel_dim))
    wk = n(ks[7], (object_dim, rel_dim))
    sym = n(ks[8], (2, symbol_dim))                        # learned symbols, seq_len=2
    wh = n(ks[9], (2 * symbol_dim, hidden));  bh = n(ks[10], (1, hidden))
    wf = n(ks[11], (hidden, 1));              bf = n(ks[12], (1, 1))
    return (w1, b1, w2, b2, w3, b3, wq, wk, sym, wh, bh, wf, bf)


if __name__ == "__main__":
    B = 200             # not a multiple of 128 -> exercises padding; 2 tiles (v7x-friendly)
    INPUT_DIM = 16
    HIDDEN = 32
    OBJECT_DIM = 32     # abstractor_kwargs['object_dim'] (= embedding_dim)
    REL_DIM = 32        # q/k projection dim inside the abstractor
    SYMBOL_DIM = 32     # abstractor symbol_dim -> head input = 2 * SYMBOL_DIM

    key = jax.random.PRNGKey(0)
    kx, ky, kp = jax.random.split(key, 3)
    x = jax.random.normal(kx, (B, INPUT_DIM), dtype=jnp.float32)
    y = jax.random.normal(ky, (B, INPUT_DIM), dtype=jnp.float32)
    raw = init_params(kp, INPUT_DIM, HIDDEN, OBJECT_DIM, REL_DIM, SYMBOL_DIM)
    prepared = prepare_params(raw, rel_dim=REL_DIM)

    out = abstractor_order_forward(prepared, x, y)
    out = jax.block_until_ready(out)

    ref = reference_forward(raw, x, y, rel_dim=REL_DIM)
    assert out.shape == (B, 1), out.shape
    assert bool(jnp.all(jnp.isfinite(out)))
    assert bool(jnp.allclose(out, ref, atol=1e-2, rtol=1e-2)), \
        float(jnp.max(jnp.abs(out - ref)))
    print("KERNEL_OK")
</pallas_src>

<mosaic_0001>
module attributes {stable_mosaic.version = 11 : i64} {
  func.func @_abstractor_order_kernel(%arg0: i32, %arg1: memref<256x16xbf16, #tpu.memory_space<vmem>>, %arg2: memref<16x32xbf16, #tpu.memory_space<vmem>>, %arg3: memref<1x32xf32, #tpu.memory_space<vmem>>, %arg4: memref<32x32xbf16, #tpu.memory_space<vmem>>, %arg5: memref<1x32xf32, #tpu.memory_space<vmem>>, %arg6: memref<32x32xbf16, #tpu.memory_space<vmem>>, %arg7: memref<1x32xf32, #tpu.memory_space<vmem>>, %arg8: memref<32x32xbf16, #tpu.memory_space<vmem>>, %arg9: memref<1x32xf32, #tpu.memory_space<vmem>>, %arg10: memref<1x32xf32, #tpu.memory_space<vmem>>, %arg11: memref<1x32xf32, #tpu.memory_space<vmem>>, %arg12: memref<1x32xbf16, #tpu.memory_space<vmem>>, %arg13: memref<1x1xf32, #tpu.memory_space<vmem>>, %arg14: memref<1x128xf32, #tpu.memory_space<vmem>>) attributes {dimension_semantics = [#tpu.dimension_semantics<parallel>], iteration_bounds = array<i64: 2>, scalar_prefetch = 0 : i64, scratch_operands = 0 : i64, tpu.core_type = #tpu.core_type<tc>, window_params = [{transform_indices = @transform_0, window_bounds = array<i64: 256, 16>}, {pipeline_mode = #tpu.pipeline_mode<synchronous>, transform_indices = @transform_1, window_bounds = array<i64: 16, 32>}, {pipeline_mode = #tpu.pipeline_mode<synchronous>, transform_indices = @transform_2, window_bounds = array<i64: 1, 32>}, {pipeline_mode = #tpu.pipeline_mode<synchronous>, transform_indices = @transform_3, window_bounds = array<i64: 32, 32>}, {pipeline_mode = #tpu.pipeline_mode<synchronous>, transform_indices = @transform_4, window_bounds = array<i64: 1, 32>}, {pipeline_mode = #tpu.pipeline_mode<synchronous>, transform_indices = @transform_5, window_bounds = array<i64: 32, 32>}, {pipeline_mode = #tpu.pipeline_mode<synchronous>, transform_indices = @transform_6, window_bounds = array<i64: 1, 32>}, {pipeline_mode = #tpu.pipeline_mode<synchronous>, transform_indices = @transform_7, window_bounds = array<i64: 32, 32>}, {pipeline_mode = #tpu.pipeline_mode<synchronous>, transform_indices = @transform_8, window_bounds = array<i64: 1, 32>}, {pipeline_mode = #tpu.pipeline_mode<synchronous>, transform_indices = @transform_9, window_bounds = array<i64: 1, 32>}, {pipeline_mode = #tpu.pipeline_mode<synchronous>, transform_indices = @transform_10, window_bounds = array<i64: 1, 32>}, {pipeline_mode = #tpu.pipeline_mode<synchronous>, transform_indices = @transform_11, window_bounds = array<i64: 1, 32>}, {pipeline_mode = #tpu.pipeline_mode<synchronous>, transform_indices = @transform_12, window_bounds = array<i64: 1, 1>}, {transform_indices = @transform_13, window_bounds = array<i64: 1, 128>}]} {
    %c0 = arith.constant 0 : index
    %c0_0 = arith.constant 0 : index
    %0 = vector.load %arg1[%c0, %c0_0] : memref<256x16xbf16, #tpu.memory_space<vmem>>, vector<256x16xbf16>
    %c0_1 = arith.constant 0 : index
    %c0_2 = arith.constant 0 : index
    %1 = vector.load %arg2[%c0_1, %c0_2] : memref<16x32xbf16, #tpu.memory_space<vmem>>, vector<16x32xbf16>
    %cst = arith.constant dense<0.000000e+00> : vector<256x32xf32>
    %2 = tpu.matmul %0, %1, %cst {dimension_numbers = #tpu.dot_dimension_numbers<[1], [0], [0], [1], [0, 0, 1, 1], [], []>} : vector<256x16xbf16>, vector<16x32xbf16>, vector<256x32xf32> -> vector<256x32xf32>
    %c0_3 = arith.constant 0 : index
    %c0_4 = arith.constant 0 : index
    %3 = vector.load %arg3[%c0_3, %c0_4] : memref<1x32xf32, #tpu.memory_space<vmem>>, vector<1x32xf32>
    %4 = vector.broadcast %3 : vector<1x32xf32> to vector<256x32xf32>
    %5 = arith.addf %2, %4 : vector<256x32xf32>
    %cst_5 = arith.constant 0.000000e+00 : f32
    %6 = vector.broadcast %cst_5 : f32 to vector<256x32xf32>
    %7 = arith.maximumf %5, %6 : vector<256x32xf32>
    %8 = arith.truncf %7 : vector<256x32xf32> to vector<256x32xbf16>
    %c0_6 = arith.constant 0 : index
    %c0_7 = arith.constant 0 : index
    %9 = vector.load %arg4[%c0_6, %c0_7] : memref<32x32xbf16, #tpu.memory_space<vmem>>, vector<32x32xbf16>
    %cst_8 = arith.constant dense<0.000000e+00> : vector<256x32xf32>
    %10 = tpu.matmul %8, %9, %cst_8 {dimension_numbers = #tpu.dot_dimension_numbers<[1], [0], [0], [1], [0, 0, 1, 1], [], []>} : vector<256x32xbf16>, vector<32x32xbf16>, vector<256x32xf32> -> vector<256x32xf32>
    %c0_9 = arith.constant 0 : index
    %c0_10 = arith.constant 0 : index
    %11 = vector.load %arg5[%c0_9, %c0_10] : memref<1x32xf32, #tpu.memory_space<vmem>>, vector<1x32xf32>
    %12 = vector.broadcast %11 : vector<1x32xf32> to vector<256x32xf32>
    %13 = arith.addf %10, %12 : vector<256x32xf32>
    %cst_11 = arith.constant 0.000000e+00 : f32
    %14 = vector.broadcast %cst_11 : f32 to vector<256x32xf32>
    %15 = arith.maximumf %13, %14 : vector<256x32xf32>
    %16 = arith.truncf %15 : vector<256x32xf32> to vector<256x32xbf16>
    %c0_12 = arith.constant 0 : index
    %c0_13 = arith.constant 0 : index
    %17 = vector.load %arg6[%c0_12, %c0_13] : memref<32x32xbf16, #tpu.memory_space<vmem>>, vector<32x32xbf16>
    %cst_14 = arith.constant dense<0.000000e+00> : vector<256x32xf32>
    %18 = tpu.matmul %16, %17, %cst_14 {dimension_numbers = #tpu.dot_dimension_numbers<[1], [0], [0], [1], [0, 0, 1, 1], [], []>} : vector<256x32xbf16>, vector<32x32xbf16>, vector<256x32xf32> -> vector<256x32xf32>
    %c0_15 = arith.constant 0 : index
    %c0_16 = arith.constant 0 : index
    %19 = vector.load %arg7[%c0_15, %c0_16] : memref<1x32xf32, #tpu.memory_space<vmem>>, vector<1x32xf32>
    %20 = vector.broadcast %19 : vector<1x32xf32> to vector<256x32xf32>
    %21 = arith.addf %18, %20 : vector<256x32xf32>
    %22 = arith.truncf %21 : vector<256x32xf32> to vector<256x32xbf16>
    %c0_17 = arith.constant 0 : index
    %c0_18 = arith.constant 0 : index
    %23 = vector.load %arg8[%c0_17, %c0_18] : memref<32x32xbf16, #tpu.memory_space<vmem>>, vector<32x32xbf16>
    %cst_19 = arith.constant dense<0.000000e+00> : vector<256x32xf32>
    %24 = tpu.matmul %22, %23, %cst_19 {dimension_numbers = #tpu.dot_dimension_numbers<[1], [0], [0], [1], [0, 0, 1, 1], [], []>} : vector<256x32xbf16>, vector<32x32xbf16>, vector<256x32xf32> -> vector<256x32xf32>
    %25 = vector.extract_strided_slice %21 {offsets = [0, 0], sizes = [128, 32], strides = [1, 1]} : vector<256x32xf32> to vector<128x32xf32>
    %26 = vector.extract_strided_slice %21 {offsets = [128, 0], sizes = [128, 32], strides = [1, 1]} : vector<256x32xf32> to vector<128x32xf32>
    %27 = arith.subf %25, %26 : vector<128x32xf32>
    %28 = vector.extract_strided_slice %24 {offsets = [0, 0], sizes = [128, 32], strides = [1, 1]} : vector<256x32xf32> to vector<128x32xf32>
    %29 = arith.mulf %28, %27 : vector<128x32xf32>
    %cst_20 = arith.constant dense<0.000000e+00> : vector<128xf32>
    %30 = vector.multi_reduction <add>, %29, %cst_20 [1] : vector<128x32xf32> to vector<128xf32>
    %31 = vector.shape_cast %30 : vector<128xf32> to vector<128x1xf32>
    %32 = vector.extract_strided_slice %24 {offsets = [128, 0], sizes = [128, 32], strides = [1, 1]} : vector<256x32xf32> to vector<128x32xf32>
    %33 = arith.mulf %32, %27 : vector<128x32xf32>
    %cst_21 = arith.constant dense<0.000000e+00> : vector<128xf32>
    %34 = vector.multi_reduction <add>, %33, %cst_21 [1] : vector<128x32xf32> to vector<128xf32>
    %35 = vector.shape_cast %34 : vector<128xf32> to vector<128x1xf32>
    %36 = math.absf %31 : vector<128x1xf32>
    %cst_22 = arith.constant 0.000000e+00 : f32
    %37 = vector.broadcast %cst_22 : f32 to vector<128x1xf32>
    %38 = arith.subf %37, %36 : vector<128x1xf32>
    %39 = math.exp %38 : vector<128x1xf32>
    %cst_23 = arith.constant 1.000000e+00 : f32
    %40 = vector.broadcast %cst_23 : f32 to vector<128x1xf32>
    %41 = arith.addf %40, %39 : vector<128x1xf32>
    %42 = tpu.reciprocal %41 {approx = true} : vector<128x1xf32> -> vector<128x1xf32>
    %cst_24 = arith.constant 0.000000e+00 : f32
    %43 = vector.broadcast %cst_24 : f32 to vector<128x1xf32>
    %44 = arith.cmpf ogt, %31, %43 : vector<128x1xf32>
    %45 = arith.mulf %39, %42 : vector<128x1xf32>
    %46 = arith.select %44, %45, %42 : vector<128x1xi1>, vector<128x1xf32>
    %47 = math.absf %35 : vector<128x1xf32>
    %cst_25 = arith.constant 0.000000e+00 : f32
    %48 = vector.broadcast %cst_25 : f32 to vector<128x1xf32>
    %49 = arith.subf %48, %47 : vector<128x1xf32>
    %50 = math.exp %49 : vector<128x1xf32>
    %cst_26 = arith.constant 1.000000e+00 : f32
    %51 = vector.broadcast %cst_26 : f32 to vector<128x1xf32>
    %52 = arith.addf %51, %50 : vector<128x1xf32>
    %53 = tpu.reciprocal %52 {approx = true} : vector<128x1xf32> -> vector<128x1xf32>
    %cst_27 = arith.constant 0.000000e+00 : f32
    %54 = vector.broadcast %cst_27 : f32 to vector<128x1xf32>
    %55 = arith.cmpf ogt, %35, %54 : vector<128x1xf32>
    %56 = arith.mulf %50, %53 : vector<128x1xf32>
    %57 = arith.select %55, %56, %53 : vector<128x1xi1>, vector<128x1xf32>
    %c0_28 = arith.constant 0 : index
    %c0_29 = arith.constant 0 : index
    %58 = vector.load %arg9[%c0_28, %c0_29] : memref<1x32xf32, #tpu.memory_space<vmem>>, vector<1x32xf32>
    %c0_30 = arith.constant 0 : index
    %c0_31 = arith.constant 0 : index
    %59 = vector.load %arg10[%c0_30, %c0_31] : memref<1x32xf32, #tpu.memory_space<vmem>>, vector<1x32xf32>
    %60 = vector.broadcast %46 : vector<128x1xf32> to vector<128x32xf32>
    %61 = vector.broadcast %59 : vector<1x32xf32> to vector<128x32xf32>
    %62 = arith.mulf %60, %61 : vector<128x32xf32>
    %63 = vector.broadcast %58 : vector<1x32xf32> to vector<128x32xf32>
    %64 = arith.addf %63, %62 : vector<128x32xf32>
    %c0_32 = arith.constant 0 : index
    %c0_33 = arith.constant 0 : index
    %65 = vector.load %arg11[%c0_32, %c0_33] : memref<1x32xf32, #tpu.memory_space<vmem>>, vector<1x32xf32>
    %66 = vector.broadcast %57 : vector<128x1xf32> to vector<128x32xf32>
    %67 = vector.broadcast %65 : vector<1x32xf32> to vector<128x32xf32>
    %68 = arith.mulf %66, %67 : vector<128x32xf32>
    %69 = arith.addf %64, %68 : vector<128x32xf32>
    %cst_34 = arith.constant 0.000000e+00 : f32
    %70 = vector.broadcast %cst_34 : f32 to vector<128x32xf32>
    %71 = arith.maximumf %69, %70 : vector<128x32xf32>
    %c0_35 = arith.constant 0 : index
    %c0_36 = arith.constant 0 : index
    %72 = vector.load %arg12[%c0_35, %c0_36] : memref<1x32xbf16, #tpu.memory_space<vmem>>, vector<1x32xbf16>
    %73 = arith.truncf %71 : vector<128x32xf32> to vector<128x32xbf16>
    %cst_37 = arith.constant dense<0.000000e+00> : vector<1x128xf32>
    %74 = tpu.matmul %72, %73, %cst_37 {dimension_numbers = #tpu.dot_dimension_numbers<[1], [1], [0], [0], [0, 0, 1, 0], [], []>} : vector<1x32xbf16>, vector<128x32xbf16>, vector<1x128xf32> -> vector<1x128xf32>
    %c0_38 = arith.constant 0 : index
    %c0_39 = arith.constant 0 : index
    %75 = vector.load %arg13[%c0_38, %c0_39] : memref<1x1xf32, #tpu.memory_space<vmem>>, vector<1x1xf32>
    %76 = vector.broadcast %75 : vector<1x1xf32> to vector<1x128xf32>
    %77 = arith.addf %74, %76 : vector<1x128xf32>
    %cst_40 = arith.constant 0.000000e+00 : f32
    %78 = vector.broadcast %cst_40 : f32 to vector<1x128xf32>
    %79 = arith.subf %78, %77 : vector<1x128xf32>
    %80 = math.absf %79 : vector<1x128xf32>
    %cst_41 = arith.constant 0.000000e+00 : f32
    %81 = vector.broadcast %cst_41 : f32 to vector<1x128xf32>
    %82 = arith.subf %81, %80 : vector<1x128xf32>
    %83 = math.exp %82 : vector<1x128xf32>
    %cst_42 = arith.constant 1.000000e+00 : f32
    %84 = vector.broadcast %cst_42 : f32 to vector<1x128xf32>
    %85 = arith.addf %84, %83 : vector<1x128xf32>
    %86 = tpu.reciprocal %85 : vector<1x128xf32> -> vector<1x128xf32>
    %cst_43 = arith.constant 0.000000e+00 : f32
    %87 = vector.broadcast %cst_43 : f32 to vector<1x128xf32>
    %88 = arith.cmpf ogt, %79, %87 : vector<1x128xf32>
    %89 = arith.mulf %83, %86 : vector<1x128xf32>
    %90 = arith.select %88, %89, %86 : vector<1x128xi1>, vector<1x128xf32>
    %c0_44 = arith.constant 0 : index
    %c0_45 = arith.constant 0 : index
    %91 = vector.load %arg14[%c0_44, %c0_45] : memref<1x128xf32, #tpu.memory_space<vmem>>, vector<1x128xf32>
    tpu.vector_store %arg14[%c0_44, %c0_45], %90 {strides = array<i32>} : memref<1x128xf32, #tpu.memory_space<vmem>>, vector<1x128xf32>,
    return
  }
  func.func @transform_0(%arg0: i32) -> (i32, i32) {
    %c0_i32 = arith.constant 0 : i32
    %c0_i32_0 = arith.constant 0 : i32
    return %arg0, %c0_i32 : i32, i32
  }
  func.func @transform_1(%arg0: i32) -> (i32, i32) {
    %c0_i32 = arith.constant 0 : i32
    %c0_i32_0 = arith.constant 0 : i32
    %c0_i32_1 = arith.constant 0 : i32
    return %c0_i32, %c0_i32_0 : i32, i32
  }
  func.func @transform_2(%arg0: i32) -> (i32, i32) {
    %c0_i32 = arith.constant 0 : i32
    %c0_i32_0 = arith.constant 0 : i32
    %c0_i32_1 = arith.constant 0 : i32
    return %c0_i32, %c0_i32_0 : i32, i32
  }
  func.func @transform_3(%arg0: i32) -> (i32, i32) {
    %c0_i32 = arith.constant 0 : i32
    %c0_i32_0 = arith.constant 0 : i32
    %c0_i32_1 = arith.constant 0 : i32
    return %c0_i32, %c0_i32_0 : i32, i32
  }
  func.func @transform_4(%arg0: i32) -> (i32, i32) {
    %c0_i32 = arith.constant 0 : i32
    %c0_i32_0 = arith.constant 0 : i32
    %c0_i32_1 = arith.constant 0 : i32
    return %c0_i32, %c0_i32_0 : i32, i32
  }
  func.func @transform_5(%arg0: i32) -> (i32, i32) {
    %c0_i32 = arith.constant 0 : i32
    %c0_i32_0 = arith.constant 0 : i32
    %c0_i32_1 = arith.constant 0 : i32
    return %c0_i32, %c0_i32_0 : i32, i32
  }
  func.func @transform_6(%arg0: i32) -> (i32, i32) {
    %c0_i32 = arith.constant 0 : i32
    %c0_i32_0 = arith.constant 0 : i32
    %c0_i32_1 = arith.constant 0 : i32
    return %c0_i32, %c0_i32_0 : i32, i32
  }
  func.func @transform_7(%arg0: i32) -> (i32, i32) {
    %c0_i32 = arith.constant 0 : i32
    %c0_i32_0 = arith.constant 0 : i32
    %c0_i32_1 = arith.constant 0 : i32
    return %c0_i32, %c0_i32_0 : i32, i32
  }
  func.func @transform_8(%arg0: i32) -> (i32, i32) {
    %c0_i32 = arith.constant 0 : i32
    %c0_i32_0 = arith.constant 0 : i32
    %c0_i32_1 = arith.constant 0 : i32
    return %c0_i32, %c0_i32_0 : i32, i32
  }
  func.func @transform_9(%arg0: i32) -> (i32, i32) {
    %c0_i32 = arith.constant 0 : i32
    %c0_i32_0 = arith.constant 0 : i32
    %c0_i32_1 = arith.constant 0 : i32
    return %c0_i32, %c0_i32_0 : i32, i32
  }
  func.func @transform_10(%arg0: i32) -> (i32, i32) {
    %c0_i32 = arith.constant 0 : i32
    %c0_i32_0 = arith.constant 0 : i32
    %c0_i32_1 = arith.constant 0 : i32
    return %c0_i32, %c0_i32_0 : i32, i32
  }
  func.func @transform_11(%arg0: i32) -> (i32, i32) {
    %c0_i32 = arith.constant 0 : i32
    %c0_i32_0 = arith.constant 0 : i32
    %c0_i32_1 = arith.constant 0 : i32
    return %c0_i32, %c0_i32_0 : i32, i32
  }
  func.func @transform_12(%arg0: i32) -> (i32, i32) {
    %c0_i32 = arith.constant 0 : i32
    %c0_i32_0 = arith.constant 0 : i32
    %c0_i32_1 = arith.constant 0 : i32
    return %c0_i32, %c0_i32_0 : i32, i32
  }
  func.func @transform_13(%arg0: i32) -> (i32, i32) {
    %c0_i32 = arith.constant 0 : i32
    %c0_i32_0 = arith.constant 0 : i32
    return %c0_i32, %arg0 : i32, i32
  }
}

</mosaic_0001>

<llo_original>
// kernel: tpu_custom_call.1
$region0: #{tpu_custom_call.1}
  #allocation0 [shape = 'u32[]', space=smem, size = 0x4, offset = 0x4, fixed_abs, tag = 'smem constant byte address 0x4 - core index']
  #allocation1 [shape = 'u32[144,128]{1,0:T(1,128)}', space=vmem, size = 0x12000, scoped, tag = 'internal scratch']
  #allocation2 [shape = 'f32[1,1]{1,0:T(1,128)S(1)}', space=vmem, size = 0x200, scoped, tag = 'scoped memory for tpu_custom_call.1']
  %s0 = inlined_call_operand.vmem [shape: bf16[512,16], index: 0, kind: input, shape index: {}]
  %s1 = inlined_call_operand.vmem [shape: bf16[16,32], index: 1, kind: input, shape index: {}]
  %s2 = inlined_call_operand.vmem [shape: f32[1,32], index: 2, kind: input, shape index: {}]
  %s3 = inlined_call_operand.vmem [shape: bf16[32,32], index: 3, kind: input, shape index: {}]
  %s4 = inlined_call_operand.vmem [shape: f32[1,32], index: 4, kind: input, shape index: {}]
  %s5 = inlined_call_operand.vmem [shape: bf16[32,32], index: 5, kind: input, shape index: {}]
  %s6 = inlined_call_operand.vmem [shape: f32[1,32], index: 6, kind: input, shape index: {}]
  %s7 = inlined_call_operand.vmem [shape: bf16[32,32], index: 7, kind: input, shape index: {}]
  %s8 = inlined_call_operand.vmem [shape: f32[1,32], index: 8, kind: input, shape index: {}]
  %s9 = inlined_call_operand.vmem [shape: f32[1,32], index: 9, kind: input, shape index: {}]
  %s10 = inlined_call_operand.vmem [shape: f32[1,32], index: 10, kind: input, shape index: {}]
  %s11 = inlined_call_operand.vmem [shape: bf16[1,32], index: 11, kind: input, shape index: {}]
  %s12 = inlined_call_operand.<no memory space> [shape: f32[1,1], index: 12, kind: input, shape index: {}]
  %s13 = inlined_call_operand.hbm [shape: f32[1,256], index: 13, kind: output, shape index: {}]
  %s14 = sld [smem:[#allocation0]]
  $region85: #{tpu_custom_call.1} parent=0
    _
  %s16 = ssub.s32 1, %s14
  %s17 = scalar_select 0, %s16, %s14
  %v18 = vstv %s12
  %19 = vst [vmem:[#allocation2] sm:$0x1] %v18
  $region1: #{tpu_custom_call.1} parent=0
    #allocation3 [shape = 'u8[1024]{0}', space=vmem, size = 0x400, scoped, tag = 'output window, operand 0']
    #allocation4 [shape = 's32[2]{0}', space=sflag, size = 0x8, scoped, tag = 'scoped memory for tpu_custom_call.1']
    %20 = vsyncpa [#allocation4], 0
    %s21 = scalar_lea.sflag [#allocation4], 1
    %22 = vsyncpa %s21, 0
    loop: start=0, step=1, limit=4
    $region2: #{tpu_custom_call.1} parent=1 // loop_pre_header
      _
    $region3: #{tpu_custom_call.1} parent=1 // loop_header
      %s24 = sphi 0, %s28
      %p25 = scmp.ge.s32.totalorder %s24, 4
      %s34 = sphi 0, %s36
      %s37 = sphi 0, %s34
      %s38 = sphi 0, %s37
      %s54 = sphi 0, %s38
      %s58 = sphi 0, %s58
      %s60 = sphi 0, %s58
      %s61 = sphi 0, %s60
      %s75 = sphi 0, %s61
      %s79 = sphi 0, %s79
      %s81 = sphi 0, %s79
      %s82 = sphi 0, %s81
      %s96 = sphi 0, %s82
      %s100 = sphi 0, %s100
      %s102 = sphi 0, %s100
      %s103 = sphi 0, %s102
      %s117 = sphi 0, %s103
      %s121 = sphi 0, %s121
      %s123 = sphi 0, %s121
      %s124 = sphi 0, %s123
      %s138 = sphi 0, %s124
      %s142 = sphi 0, %s142
      %s144 = sphi 0, %s142
      %s145 = sphi 0, %s144
      %s159 = sphi 0, %s145
      %s163 = sphi 0, %s163
      %s165 = sphi 0, %s163
      %s166 = sphi 0, %s165
      %s180 = sphi 0, %s166
      %s184 = sphi 0, %s184
      %s186 = sphi 0, %s184
      %s187 = sphi 0, %s186
      %s201 = sphi 0, %s187
      %s205 = sphi 0, %s205
      %s207 = sphi 0, %s205
      %s208 = sphi 0, %s207
      %s222 = sphi 0, %s208
      %s226 = sphi 0, %s226
      %s228 = sphi 0, %s226
      %s229 = sphi 0, %s228
      %s243 = sphi 0, %s229
      %s247 = sphi 0, %s247
      %s249 = sphi 0, %s247
      %s250 = sphi 0, %s249
      %s264 = sphi 0, %s250
      %s268 = sphi 0, %s268
      %s270 = sphi 0, %s268
      %s271 = sphi 0, %s270
      %s285 = sphi 0, %s271
      %s289 = sphi 0, %s289
      %s291 = sphi 0, %s289
      %s292 = sphi 0, %s291
      %s306 = sphi 0, %s292
      %s312 = sphi 0, %s314
      %s315 = sphi 0, %s312
      %s316 = sphi 0, %s315
      %s332 = sphi 0, %s316
    $region4: #{tpu_custom_call.1} parent=1 // loop_header_branch
      %27 = sbr.rel (%p25) target = $region8
    $region5: #{tpu_custom_call.1} parent=1 // loop_body
      %s29 = ssub.s32 %s24, 1
      %s30 = ssub.s32 %s24, 2
      %s31 = sadd.s32 %s24, 1
      %s32 = ssub.s32 %s24, %s31
      %p33 = scmp.eq.s32.totalorder %s32, 0
      %s35 = sadd.s32 %s34, 1
      %s36 = scalar_select %p33, %s34, %s35
      %p39 = pneg %p33
      %p40 = scmp.eq.s32.totalorder %s24, 1
      %p41 = por %p39, %p40
      %p42 = scmp.ne.s32.totalorder %s34, %s37
      %p43 = scmp.eq.s32.totalorder %s24, 0
      %p44 = por %p42, %p43
      %p45 = scmp.ne.s32.totalorder %s34, %s37
      %p46 = scmp.eq.s32.totalorder %s29, 1
      %p47 = por %p45, %p46
      %p48 = scmp.ne.s32.totalorder %s37, %s38
      %p49 = scmp.eq.s32.totalorder %s29, 0
      %p50 = por %p48, %p49
      %p51 = scmp.ne.s32.totalorder %s37, %s38
      %p52 = scmp.eq.s32.totalorder %s30, 1
      %p53 = por %p51, %p52
      %p55 = scmp.ne.s32.totalorder %s38, %s54
      %p56 = scmp.eq.s32.totalorder %s30, 0
      %p57 = por %p55, %p56
      %s59 = sadd.s32 %s58, 1
      %p62 = scmp.eq.s32.totalorder %s24, 1
      %p63 = scmp.ne.s32.totalorder %s58, %s60
      %p64 = scmp.eq.s32.totalorder %s24, 0
      %p65 = por %p63, %p64
      %p66 = scmp.ne.s32.totalorder %s58, %s60
      %p67 = scmp.eq.s32.totalorder %s29, 1
      %p68 = por %p66, %p67
      %p69 = scmp.ne.s32.totalorder %s60, %s61
      %p70 = scmp.eq.s32.totalorder %s29, 0
      %p71 = por %p69, %p70
      %p72 = scmp.ne.s32.totalorder %s60, %s61
      %p73 = scmp.eq.s32.totalorder %s30, 1
      %p74 = por %p72, %p73
      %p76 = scmp.ne.s32.totalorder %s61, %s75
      %p77 = scmp.eq.s32.totalorder %s30, 0
      %p78 = por %p76, %p77
      %s80 = sadd.s32 %s79, 1
      %p83 = scmp.eq.s32.totalorder %s24, 1
      %p84 = scmp.ne.s32.totalorder %s79, %s81
      %p85 = scmp.eq.s32.totalorder %s24, 0
      %p86 = por %p84, %p85
      %p87 = scmp.ne.s32.totalorder %s79, %s81
      %p88 = scmp.eq.s32.totalorder %s29, 1
      %p89 = por %p87, %p88
      %p90 = scmp.ne.s32.totalorder %s81, %s82
      %p91 = scmp.eq.s32.totalorder %s29, 0
      %p92 = por %p90, %p91
      %p93 = scmp.ne.s32.totalorder %s81, %s82
      %p94 = scmp.eq.s32.totalorder %s30, 1
      %p95 = por %p93, %p94
      %p97 = scmp.ne.s32.totalorder %s82, %s96
      %p98 = scmp.eq.s32.totalorder %s30, 0
      %p99 = por %p97, %p98
      %s101 = sadd.s32 %s100, 1
      %p104 = scmp.eq.s32.totalorder %s24, 1
      %p105 = scmp.ne.s32.totalorder %s100, %s102
      %p106 = scmp.eq.s32.totalorder %s24, 0
      %p107 = por %p105, %p106
      %p108 = scmp.ne.s32.totalorder %s100, %s102
      %p109 = scmp.eq.s32.totalorder %s29, 1
      %p110 = por %p108, %p109
      %p111 = scmp.ne.s32.totalorder %s102, %s103
      %p112 = scmp.eq.s32.totalorder %s29, 0
      %p113 = por %p111, %p112
      %p114 = scmp.ne.s32.totalorder %s102, %s103
      %p115 = scmp.eq.s32.totalorder %s30, 1
      %p116 = por %p114, %p115
      %p118 = scmp.ne.s32.totalorder %s103, %s117
      %p119 = scmp.eq.s32.totalorder %s30, 0
      %p120 = por %p118, %p119
      %s122 = sadd.s32 %s121, 1
      %p125 = scmp.eq.s32.totalorder %s24, 1
      %p126 = scmp.ne.s32.totalorder %s121, %s123
      %p127 = scmp.eq.s32.totalorder %s24, 0
      %p128 = por %p126, %p127
      %p129 = scmp.ne.s32.totalorder %s121, %s123
      %p130 = scmp.eq.s32.totalorder %s29, 1
      %p131 = por %p129, %p130
      %p132 = scmp.ne.s32.totalorder %s123, %s124
      %p133 = scmp.eq.s32.totalorder %s29, 0
      %p134 = por %p132, %p133
      %p135 = scmp.ne.s32.totalorder %s123, %s124
      %p136 = scmp.eq.s32.totalorder %s30, 1
      %p137 = por %p135, %p136
      %p139 = scmp.ne.s32.totalorder %s124, %s138
      %p140 = scmp.eq.s32.totalorder %s30, 0
      %p141 = por %p139, %p140
      %s143 = sadd.s32 %s142, 1
      %p146 = scmp.eq.s32.totalorder %s24, 1
      %p147 = scmp.ne.s32.totalorder %s142, %s144
      %p148 = scmp.eq.s32.totalorder %s24, 0
      %p149 = por %p147, %p148
      %p150 = scmp.ne.s32.totalorder %s142, %s144
      %p151 = scmp.eq.s32.totalorder %s29, 1
      %p152 = por %p150, %p151
      %p153 = scmp.ne.s32.totalorder %s144, %s145
      %p154 = scmp.eq.s32.totalorder %s29, 0
      %p155 = por %p153, %p154
      %p156 = scmp.ne.s32.totalorder %s144, %s145
      %p157 = scmp.eq.s32.totalorder %s30, 1
      %p158 = por %p156, %p157
      %p160 = scmp.ne.s32.totalorder %s145, %s159
      %p161 = scmp.eq.s32.totalorder %s30, 0
      %p162 = por %p160, %p161
      %s164 = sadd.s32 %s163, 1
      %p167 = scmp.eq.s32.totalorder %s24, 1
      %p168 = scmp.ne.s32.totalorder %s163, %s165
      %p169 = scmp.eq.s32.totalorder %s24, 0
      %p170 = por %p168, %p169
      %p171 = scmp.ne.s32.totalorder %s163, %s165
      %p172 = scmp.eq.s32.totalorder %s29, 1
      %p173 = por %p171, %p172
      %p174 = scmp.ne.s32.totalorder %s165, %s166
      %p175 = scmp.eq.s32.totalorder %s29, 0
      %p176 = por %p174, %p175
      %p177 = scmp.ne.s32.totalorder %s165, %s166
      %p178 = scmp.eq.s32.totalorder %s30, 1
      %p179 = por %p177, %p178
      %p181 = scmp.ne.s32.totalorder %s166, %s180
      %p182 = scmp.eq.s32.totalorder %s30, 0
      %p183 = por %p181, %p182
      %s185 = sadd.s32 %s184, 1
      %p188 = scmp.eq.s32.totalorder %s24, 1
      %p189 = scmp.ne.s32.totalorder %s184, %s186
      %p190 = scmp.eq.s32.totalorder %s24, 0
      %p191 = por %p189, %p190
      %p192 = scmp.ne.s32.totalorder %s184, %s186
      %p193 = scmp.eq.s32.totalorder %s29, 1
      %p194 = por %p192, %p193
      %p195 = scmp.ne.s32.totalorder %s186, %s187
      %p196 = scmp.eq.s32.totalorder %s29, 0
      %p197 = por %p195, %p196
      %p198 = scmp.ne.s32.totalorder %s186, %s187
      %p199 = scmp.eq.s32.totalorder %s30, 1
      %p200 = por %p198, %p199
      %p202 = scmp.ne.s32.totalorder %s187, %s201
      %p203 = scmp.eq.s32.totalorder %s30, 0
      %p204 = por %p202, %p203
      %s206 = sadd.s32 %s205, 1
      %p209 = scmp.eq.s32.totalorder %s24, 1
      %p210 = scmp.ne.s32.totalorder %s205, %s207
      %p211 = scmp.eq.s32.totalorder %s24, 0
      %p212 = por %p210, %p211
      %p213 = scmp.ne.s32.totalorder %s205, %s207
      %p214 = scmp.eq.s32.totalorder %s29, 1
      %p215 = por %p213, %p214
      %p216 = scmp.ne.s32.totalorder %s207, %s208
      %p217 = scmp.eq.s32.totalorder %s29, 0
      %p218 = por %p216, %p217
      %p219 = scmp.ne.s32.totalorder %s207, %s208
      %p220 = scmp.eq.s32.totalorder %s30, 1
      %p221 = por %p219, %p220
      %p223 = scmp.ne.s32.totalorder %s208, %s222
      %p224 = scmp.eq.s32.totalorder %s30, 0
      %p225 = por %p223, %p224
      %s227 = sadd.s32 %s226, 1
      %p230 = scmp.eq.s32.totalorder %s24, 1
      %p231 = scmp.ne.s32.totalorder %s226, %s228
      %p232 = scmp.eq.s32.totalorder %s24, 0
      %p233 = por %p231, %p232
      %p234 = scmp.ne.s32.totalorder %s226, %s228
      %p235 = scmp.eq.s32.totalorder %s29, 1
      %p236 = por %p234, %p235
      %p237 = scmp.ne.s32.totalorder %s228, %s229
      %p238 = scmp.eq.s32.totalorder %s29, 0
      %p239 = por %p237, %p238
      %p240 = scmp.ne.s32.totalorder %s228, %s229
      %p241 = scmp.eq.s32.totalorder %s30, 1
      %p242 = por %p240, %p241
      %p244 = scmp.ne.s32.totalorder %s229, %s243
      %p245 = scmp.eq.s32.totalorder %s30, 0
      %p246 = por %p244, %p245
      %s248 = sadd.s32 %s247, 1
      %p251 = scmp.eq.s32.totalorder %s24, 1
      %p252 = scmp.ne.s32.totalorder %s247, %s249
      %p253 = scmp.eq.s32.totalorder %s24, 0
      %p254 = por %p252, %p253
      %p255 = scmp.ne.s32.totalorder %s247, %s249
      %p256 = scmp.eq.s32.totalorder %s29, 1
      %p257 = por %p255, %p256
      %p258 = scmp.ne.s32.totalorder %s249, %s250
      %p259 = scmp.eq.s32.totalorder %s29, 0
      %p260 = por %p258, %p259
      %p261 = scmp.ne.s32.totalorder %s249, %s250
      %p262 = scmp.eq.s32.totalorder %s30, 1
      %p263 = por %p261, %p262
      %p265 = scmp.ne.s32.totalorder %s250, %s264
      %p266 = scmp.eq.s32.totalorder %s30, 0
      %p267 = por %p265, %p266
      %s269 = sadd.s32 %s268, 1
      %p272 = scmp.eq.s32.totalorder %s24, 1
      %p273 = scmp.ne.s32.totalorder %s268, %s270
      %p274 = scmp.eq.s32.totalorder %s24, 0
      %p275 = por %p273, %p274
      %p276 = scmp.ne.s32.totalorder %s268, %s270
      %p277 = scmp.eq.s32.totalorder %s29, 1
      %p278 = por %p276, %p277
      %p279 = scmp.ne.s32.totalorder %s270, %s271
      %p280 = scmp.eq.s32.totalorder %s29, 0
      %p281 = por %p279, %p280
      %p282 = scmp.ne.s32.totalorder %s270, %s271
      %p283 = scmp.eq.s32.totalorder %s30, 1
      %p284 = por %p282, %p283
      %p286 = scmp.ne.s32.totalorder %s271, %s285
      %p287 = scmp.eq.s32.totalorder %s30, 0
      %p288 = por %p286, %p287
      %s290 = sadd.s32 %s289, 1
      %p293 = scmp.eq.s32.totalorder %s24, 1
      %p294 = scmp.ne.s32.totalorder %s289, %s291
      %p295 = scmp.eq.s32.totalorder %s24, 0
      %p296 = por %p294, %p295
      %p297 = scmp.ne.s32.totalorder %s289, %s291
      %p298 = scmp.eq.s32.totalorder %s29, 1
      %p299 = por %p297, %p298
      %p300 = scmp.ne.s32.totalorder %s291, %s292
      %p301 = scmp.eq.s32.totalorder %s29, 0
      %p302 = por %p300, %p301
      %p303 = scmp.ne.s32.totalorder %s291, %s292
      %p304 = scmp.eq.s32.totalorder %s30, 1
      %p305 = por %p303, %p304
      %p307 = scmp.ne.s32.totalorder %s292, %s306
      %p308 = scmp.eq.s32.totalorder %s30, 0
      %p309 = por %p307, %p308
      %s310 = ssub.s32 %s24, %s31
      %p311 = scmp.eq.s32.totalorder %s310, 0
      %s313 = sadd.s32 %s312, 1
      %s314 = scalar_select %p311, %s312, %s313
      %p317 = pneg %p311
      %p318 = scmp.eq.s32.totalorder %s24, 1
      %p319 = por %p317, %p318
      %p320 = scmp.ne.s32.totalorder %s312, %s315
      %p321 = scmp.eq.s32.totalorder %s24, 0
      %p322 = por %p320, %p321
      %p323 = scmp.ne.s32.totalorder %s312, %s315
      %p324 = scmp.eq.s32.totalorder %s29, 1
      %p325 = por %p323, %p324
      %p326 = scmp.ne.s32.totalorder %s315, %s316
      %p327 = scmp.eq.s32.totalorder %s29, 0
      %p328 = por %p326, %p327
      %p329 = scmp.ne.s32.totalorder %s315, %s316
      %p330 = scmp.eq.s32.totalorder %s30, 1
      %p331 = por %p329, %p330
      %p333 = scmp.ne.s32.totalorder %s316, %s332
      %p334 = scmp.eq.s32.totalorder %s30, 0
      %p335 = por %p333, %p334
      %p336 = scmp.le.s32.totalorder 1, %s24
      %p337 = scmp.lt.s32.totalorder %s24, 3
      %p338 = pnand %p336, %p337
      %p339 = pneg %p338
      // Predicated region
      $region9: #{tpu_custom_call.1} parent=5 // pred_check
        _
      $region10: #{tpu_custom_call.1} parent=5 // pred_check_branch
        %341 = sbr.rel (%p338) target = $region12
      $region11: #{tpu_custom_call.1} parent=5 // pred_region
        %s342 = ssub.s32 %s24, 1
        // Predicated region
        $region13: #{tpu_custom_call.1} parent=11 // pred_check
          %p343 = pneg %p71
        $region14: #{tpu_custom_call.1} parent=11 // pred_check_branch
          %345 = sbr.rel (%p343) target = $region16
        $region15: #{tpu_custom_call.1} parent=11 // pred_region
          _
        $region16: #{tpu_custom_call.1} parent=11 // pred_fallthru
          _
        // Predicated region
        $region17: #{tpu_custom_call.1} parent=11 // pred_check
          %p346 = pneg %p92
        $region18: #{tpu_custom_call.1} parent=11 // pred_check_branch
          %348 = sbr.rel (%p346) target = $region20
        $region19: #{tpu_custom_call.1} parent=11 // pred_region
          _
        $region20: #{tpu_custom_call.1} parent=11 // pred_fallthru
          _
        // Predicated region
        $region21: #{tpu_custom_call.1} parent=11 // pred_check
          %p349 = pneg %p113
        $region22: #{tpu_custom_call.1} parent=11 // pred_check_branch
          %351 = sbr.rel (%p349) target = $region24
        $region23: #{tpu_custom_call.1} parent=11 // pred_region
          _
        $region24: #{tpu_custom_call.1} parent=11 // pred_fallthru
          _
        // Predicated region
        $region25: #{tpu_custom_call.1} parent=11 // pred_check
          %p352 = pneg %p134
        $region26: #{tpu_custom_call.1} parent=11 // pred_check_branch
          %354 = sbr.rel (%p352) target = $region28
        $region27: #{tpu_custom_call.1} parent=11 // pred_region
          _
        $region28: #{tpu_custom_call.1} parent=11 // pred_fallthru
          _
        // Predicated region
        $region29: #{tpu_custom_call.1} parent=11 // pred_check
          %p355 = pneg %p155
        $region30: #{tpu_custom_call.1} parent=11 // pred_check_branch
          %357 = sbr.rel (%p355) target = $region32
        $region31: #{tpu_custom_call.1} parent=11 // pred_region
          _
        $region32: #{tpu_custom_call.1} parent=11 // pred_fallthru
          _
        // Predicated region
        $region33: #{tpu_custom_call.1} parent=11 // pred_check
          %p358 = pneg %p176
        $region34: #{tpu_custom_call.1} parent=11 // pred_check_branch
          %360 = sbr.rel (%p358) target = $region36
        $region35: #{tpu_custom_call.1} parent=11 // pred_region
          _
        $region36: #{tpu_custom_call.1} parent=11 // pred_fallthru
          _
        // Predicated region
        $region37: #{tpu_custom_call.1} parent=11 // pred_check
          %p361 = pneg %p197
        $region38: #{tpu_custom_call.1} parent=11 // pred_check_branch
          %363 = sbr.rel (%p361) target = $region40
        $region39: #{tpu_custom_call.1} parent=11 // pred_region
          _
        $region40: #{tpu_custom_call.1} parent=11 // pred_fallthru
          _
        // Predicated region
        $region41: #{tpu_custom_call.1} parent=11 // pred_check
          %p364 = pneg %p218
        $region42: #{tpu_custom_call.1} parent=11 // pred_check_branch
          %366 = sbr.rel (%p364) target = $region44
        $region43: #{tpu_custom_call.1} parent=11 // pred_region
          _
        $region44: #{tpu_custom_call.1} parent=11 // pred_fallthru
          _
        // Predicated region
        $region45: #{tpu_custom_call.1} parent=11 // pred_check
          %p367 = pneg %p239
        $region46: #{tpu_custom_call.1} parent=11 // pred_check_branch
          %369 = sbr.rel (%p367) target = $region48
        $region47: #{tpu_custom_call.1} parent=11 // pred_region
          _
        $region48: #{tpu_custom_call.1} parent=11 // pred_fallthru
          _
        // Predicated region
        $region49: #{tpu_custom_call.1} parent=11 // pred_check
          %p370 = pneg %p260
        $region50: #{tpu_custom_call.1} parent=11 // pred_check_branch
          %372 = sbr.rel (%p370) target = $region52
        $region51: #{tpu_custom_call.1} parent=11 // pred_region
          _
        $region52: #{tpu_custom_call.1} parent=11 // pred_fallthru
          _
        // Predicated region
        $region53: #{tpu_custom_call.1} parent=11 // pred_check
          %p373 = pneg %p281
        $region54: #{tpu_custom_call.1} parent=11 // pred_check_branch
          %375 = sbr.rel (%p373) target = $region56
        $region55: #{tpu_custom_call.1} parent=11 // pred_region
          _
        $region56: #{tpu_custom_call.1} parent=11 // pred_fallthru
          _
        // Predicated region
        $region57: #{tpu_custom_call.1} parent=11 // pred_check
          %p376 = pneg %p302
        $region58: #{tpu_custom_call.1} parent=11 // pred_check_branch
          %378 = sbr.rel (%p376) target = $region60
        $region59: #{tpu_custom_call.1} parent=11 // pred_region
          _
        $region60: #{tpu_custom_call.1} parent=11 // pred_fallthru
          _
      $region12: #{tpu_custom_call.1} parent=5 // pred_fallthru
        _
      %p379 = scmp.lt.s32.totalorder %s24, 2
      // Predicated region
      $region61: #{tpu_custom_call.1} parent=5 // pred_check
        %p380 = pneg %p379
      $region62: #{tpu_custom_call.1} parent=5 // pred_check_branch
        %382 = sbr.rel (%p380) target = $region64
      $region63: #{tpu_custom_call.1} parent=5 // pred_region
        // Predicated region
        $region65: #{tpu_custom_call.1} parent=63 // pred_check
          %p383 = pneg %p44
        $region66: #{tpu_custom_call.1} parent=63 // pred_check_branch
          %385 = sbr.rel (%p383) target = $region68
        $region67: #{tpu_custom_call.1} parent=63 // pred_region
          %s386 = smul.u32 32, %s24
          %p387 = scmp.lt.s32.totalorder %s386, 63
          %s388 = scalar_select %p387, %s386, 63
          %s389 = smul.addr %s388, 4
          %s390 = scalar_lea.vmem %s0, %s389
          %s391 = smul.u32 32, %s24
        $region68: #{tpu_custom_call.1} parent=63 // pred_fallthru
          _
      $region64: #{tpu_custom_call.1} parent=5 // pred_fallthru
        _
      %p392 = scmp.le.s32.totalorder 1, %s24
      %p393 = scmp.lt.s32.totalorder %s24, 3
      %p394 = pnand %p392, %p393
      %p395 = pneg %p394
      // Predicated region
      $region69: #{tpu_custom_call.1} parent=5 // pred_check
        _
      $region70: #{tpu_custom_call.1} parent=5 // pred_check_branch
        %397 = sbr.rel (%p394) target = $region72
      $region71: #{tpu_custom_call.1} parent=5 // pred_region
        %s398 = ssub.s32 %s24, 1
        %s399 = smul.u32 32, %s29
        %p400 = scmp.lt.s32.totalorder %s399, 63
        %s401 = scalar_select %p400, %s399, 63
        %s402 = smul.addr %s401, 4
        %s403 = scalar_lea.vmem %s0, %s402
        %p404 = pneg %p50
        %p405 = pneg %p47
        %p406 = pneg %p71
        %p407 = pneg %p68
        %p408 = pneg %p92
        %p409 = pneg %p89
        %p410 = pneg %p113
        %p411 = pneg %p110
        %p412 = pneg %p134
        %p413 = pneg %p131
        %p414 = pneg %p155
        %p415 = pneg %p152
        %p416 = pneg %p176
        %p417 = pneg %p173
        %p418 = pneg %p197
        %p419 = pneg %p194
        %p420 = pneg %p218
        %p421 = pneg %p215
        %p422 = pneg %p239
        %p423 = pneg %p236
        %p424 = pneg %p260
        %p425 = pneg %p257
        %p426 = pneg %p281
        %p427 = pneg %p278
        %p428 = pneg %p302
        %p429 = pneg %p299
        %p430 = pneg %p328
        %p431 = pneg %p325
        %s432 = sand.u32 %s315, 1
        %s433 = scalar_lea.sflag [#allocation4], %s432
        %s434 = sand.u32 %s315, 1
        %s435 = scalar_lea.vmem [#allocation3], %s434
        %s436 = smul.u32 32, %s29
        %p437 = scmp.lt.s32.totalorder %s436, 63
        %s438 = scalar_select %p437, %s436, 63
        %s439 = smul.addr %s438, 4
        %s440 = scalar_lea.vmem %s0, %s439
        %s441 = smul.u32 32, %s29
        %v443 = vld [vmem:[%s440] sm:$0xf]
        %v444 = vld [vmem:[%s440 + $0x4] sm:$0xf]
        %v445 = vld [vmem:[%s440 + $0x8] sm:$0xf]
        %v446 = vld [vmem:[%s440 + $0xc] sm:$0xf]
        %v447 = vld [vmem:[%s440 + $0x10] sm:$0xf]
        %v448 = vld [vmem:[%s440 + $0x14] sm:$0xf]
        %v449 = vld [vmem:[%s440 + $0x18] sm:$0xf]
        %v450 = vld [vmem:[%s440 + $0x1c] sm:$0xf]
        %v451 = vld [vmem:[%s440 + $0x20] sm:$0xf]
        %v452 = vld [vmem:[%s440 + $0x24] sm:$0xf]
        %v453 = vld [vmem:[%s440 + $0x28] sm:$0xf]
        %v454 = vld [vmem:[%s440 + $0x2c] sm:$0xf]
        %v455 = vld [vmem:[%s440 + $0x30] sm:$0xf]
        %v456 = vld [vmem:[%s440 + $0x34] sm:$0xf]
        %v457 = vld [vmem:[%s440 + $0x38] sm:$0xf]
        %v458 = vld [vmem:[%s440 + $0x3c] sm:$0xf]
        %v459 = vld [vmem:[%s440 + $0x40] sm:$0xf]
        %v460 = vld [vmem:[%s440 + $0x44] sm:$0xf]
        %v461 = vld [vmem:[%s440 + $0x48] sm:$0xf]
        %v462 = vld [vmem:[%s440 + $0x4c] sm:$0xf]
        %v463 = vld [vmem:[%s440 + $0x50] sm:$0xf]
        %v464 = vld [vmem:[%s440 + $0x54] sm:$0xf]
        %v465 = vld [vmem:[%s440 + $0x58] sm:$0xf]
        %v466 = vld [vmem:[%s440 + $0x5c] sm:$0xf]
        %v467 = vld [vmem:[%s440 + $0x60] sm:$0xf]
        %v468 = vld [vmem:[%s440 + $0x64] sm:$0xf]
        %v469 = vld [vmem:[%s440 + $0x68] sm:$0xf]
        %v470 = vld [vmem:[%s440 + $0x6c] sm:$0xf]
        %v471 = vld [vmem:[%s440 + $0x70] sm:$0xf]
        %v472 = vld [vmem:[%s440 + $0x74] sm:$0xf]
        %v473 = vld [vmem:[%s440 + $0x78] sm:$0xf]
        %v474 = vld [vmem:[%s440 + $0x7c] sm:$0xf]
        %v475 = vld [vmem:[%s1] sm:$0xf]
        %v476 = vld [vmem:[%s1 + $0x4] sm:$0xf]
        %v477 = vld [vmem:[%s2] sm:$0x1]
        %v479 = vlaneseq
        %v480 = vshrl.u32 %v479, 7
        %v481 = vsub.s32 0, %v480
        %v482 = vrot.slane %v477, %v481
        %v516 = vunpack.c.l.b16 %v443
        %v517 = vunpack.c.l.b16 %v444
        %v518 = vunpack.c.l.b16 %v445
        %v519 = vunpack.c.l.b16 %v446
        %v520 = vunpack.c.l.b16 %v447
        %v521 = vunpack.c.l.b16 %v448
        %v522 = vunpack.c.l.b16 %v449
        %v523 = vunpack.c.l.b16 %v450
        %v524 = vunpack.c.l.b16 %v451
        %v525 = vunpack.c.l.b16 %v452
        %v526 = vunpack.c.l.b16 %v453
        %v527 = vunpack.c.l.b16 %v454
        %v528 = vunpack.c.l.b16 %v455
        %v529 = vunpack.c.l.b16 %v456
        %v530 = vunpack.c.l.b16 %v457
        %v531 = vunpack.c.l.b16 %v458
        %v532 = vunpack.c.l.b16 %v459
        %v533 = vunpack.c.l.b16 %v460
        %v534 = vunpack.c.l.b16 %v461
        %v535 = vunpack.c.l.b16 %v462
        %v536 = vunpack.c.l.b16 %v463
        %v537 = vunpack.c.l.b16 %v464
        %v538 = vunpack.c.l.b16 %v465
        %v539 = vunpack.c.l.b16 %v466
        %v540 = vunpack.c.l.b16 %v467
        %v541 = vunpack.c.l.b16 %v468
        %v542 = vunpack.c.l.b16 %v469
        %v543 = vunpack.c.l.b16 %v470
        %v544 = vunpack.c.l.b16 %v471
        %v545 = vunpack.c.l.b16 %v472
        %v546 = vunpack.c.l.b16 %v473
        %v547 = vunpack.c.l.b16 %v474
        %v548 = vpack.c.b16 %v517, %v516
        %v549 = vpack.c.b16 %v519, %v518
        %v550 = vpack.c.b16 %v521, %v520
        %v551 = vpack.c.b16 %v523, %v522
        %v552 = vpack.c.b16 %v525, %v524
        %v553 = vpack.c.b16 %v527, %v526
        %v554 = vpack.c.b16 %v529, %v528
        %v555 = vpack.c.b16 %v531, %v530
        %v556 = vpack.c.b16 %v533, %v532
        %v557 = vpack.c.b16 %v535, %v534
        %v558 = vpack.c.b16 %v537, %v536
        %v559 = vpack.c.b16 %v539, %v538
        %v560 = vpack.c.b16 %v541, %v540
        %v561 = vpack.c.b16 %v543, %v542
        %v562 = vpack.c.b16 %v545, %v544
        %v563 = vpack.c.b16 %v547, %v546
        %v566 = vunpack.c.l.b16 %v475
        %v567 = vunpack.c.l.b16 %v476
        %v568 = vpack.c.b16 %v567, %v566
        %vm570 = vcmask 130048
        %v572 = vsel %vm570, %v548, 0
        %v575 = vsel %vm570, %v549, 0
        %v578 = vsel %vm570, %v550, 0
        %v581 = vsel %vm570, %v551, 0
        %v584 = vsel %vm570, %v552, 0
        %v587 = vsel %vm570, %v553, 0
        %v590 = vsel %vm570, %v554, 0
        %v593 = vsel %vm570, %v555, 0
        %v596 = vsel %vm570, %v556, 0
        %v599 = vsel %vm570, %v557, 0
        %v602 = vsel %vm570, %v558, 0
        %v605 = vsel %vm570, %v559, 0
        %v608 = vsel %vm570, %v560, 0
        %v611 = vsel %vm570, %v561, 0
        %v614 = vsel %vm570, %v562, 0
        %v617 = vsel %vm570, %v563, 0
        %619 = vmatprep.subr.bf16.mxu0 0
        %620 = vmatpush1.bf16.msra.mxu0 %v568
        %621 = vmatprep.subr.bf16.mxu0 0
        %622 = vmatpush1.bf16.msra.mxu0 0
        %623 = vmatprep.subr.bf16.mxu0 0
        %624 = vmatpush1.bf16.msra.mxu0 0
        %625 = vmatprep.subr.bf16.mxu0 0
        %626 = vmatpush1.bf16.msra.mxu0 0
        %627 = vmatprep.subr.bf16.mxu0 0
        %628 = vmatpush1.bf16.msra.mxu0 0
        %629 = vmatprep.subr.bf16.mxu0 0
        %630 = vmatpush1.bf16.msra.mxu0 0
        %631 = vmatprep.subr.bf16.mxu0 0
        %632 = vmatpush1.bf16.msra.mxu0 0
        %633 = vmatprep.subr.bf16.mxu0 0
        %634 = vmatpush1.bf16.msra.mxu0 0
        %635 = vmatprep.subr.bf16.mxu0 0
        %636 = vmatpush1.bf16.msra.mxu0 0
        %637 = vmatprep.subr.bf16.mxu0 0
        %638 = vmatpush1.bf16.msra.mxu0 0
        %639 = vmatprep.subr.bf16.mxu0 0
        %640 = vmatpush1.bf16.msra.mxu0 0
        %641 = vmatprep.subr.bf16.mxu0 0
        %642 = vmatpush1.bf16.msra.mxu0 0
        %643 = vmatprep.subr.bf16.mxu0 0
        %644 = vmatpush1.bf16.msra.mxu0 0
        %645 = vmatprep.subr.bf16.mxu0 0
        %646 = vmatpush1.bf16.msra.mxu0 0
        %647 = vmatprep.subr.bf16.mxu0 0
        %648 = vmatpush1.bf16.msra.mxu0 0
        %649 = vmatprep.subr.bf16.mxu0 0
        %650 = vmatpush1.bf16.msra.mxu0 0
        %651 = vmatprep.mubr.bf16.mxu0 0
        %652 = vmatmul.mubr.bf16.gmra.mrb[0].mxu0 %v572
        %v653 = vpop.f32.mrb[0].mxu0
        %v654 = vadd.f32 %v482, %v653
        %v655 = vpop.f32.mrb[0].mxu0
        %v656 = vpop.f32.mrb[0].mxu0
        %v657 = vadd.f32 %v482, %v656
        %v658 = vpop.f32.mrb[0].mxu0
        %659 = vmatprep.mubr.bf16.mxu0 0
        %660 = vmatmul.mubr.bf16.gmra.mrb[0].mxu0 %v575
        %v661 = vpop.f32.mrb[0].mxu0
        %v662 = vadd.f32 %v482, %v661
        %v663 = vpop.f32.mrb[0].mxu0
        %v664 = vpop.f32.mrb[0].mxu0
        %v665 = vadd.f32 %v482, %v664
        %v666 = vpop.f32.mrb[0].mxu0
        %667 = vmatprep.mubr.bf16.mxu0 0
        %668 = vmatmul.mubr.bf16.gmra.mrb[0].mxu0 %v578
        %v669 = vpop.f32.mrb[0].mxu0
        %v670 = vadd.f32 %v482, %v669
        %v671 = vpop.f32.mrb[0].mxu0
        %v672 = vpop.f32.mrb[0].mxu0
        %v673 = vadd.f32 %v482, %v672
        %v674 = vpop.f32.mrb[0].mxu0
        %675 = vmatprep.mubr.bf16.mxu0 0
        %676 = vmatmul.mubr.bf16.gmra.mrb[0].mxu0 %v581
        %v677 = vpop.f32.mrb[0].mxu0
        %v678 = vadd.f32 %v482, %v677
        %v679 = vpop.f32.mrb[0].mxu0
        %v680 = vpop.f32.mrb[0].mxu0
        %v681 = vadd.f32 %v482, %v680
        %v682 = vpop.f32.mrb[0].mxu0
        %683 = vmatprep.mubr.bf16.mxu0 0
        %684 = vmatmul.mubr.bf16.gmra.mrb[0].mxu0 %v584
        %v685 = vpop.f32.mrb[0].mxu0
        %v686 = vadd.f32 %v482, %v685
        %v687 = vpop.f32.mrb[0].mxu0
        %v688 = vpop.f32.mrb[0].mxu0
        %v689 = vadd.f32 %v482, %v688
        %v690 = vpop.f32.mrb[0].mxu0
        %691 = vmatprep.mubr.bf16.mxu0 0
        %692 = vmatmul.mubr.bf16.gmra.mrb[0].mxu0 %v587
        %v693 = vpop.f32.mrb[0].mxu0
        %v694 = vadd.f32 %v482, %v693
        %v695 = vpop.f32.mrb[0].mxu0
        %v696 = vpop.f32.mrb[0].mxu0
        %v697 = vadd.f32 %v482, %v696
        %v698 = vpop.f32.mrb[0].mxu0
        %699 = vmatprep.mubr.bf16.mxu0 0
        %700 = vmatmul.mubr.bf16.gmra.mrb[0].mxu0 %v590
        %v701 = vpop.f32.mrb[0].mxu0
        %v702 = vadd.f32 %v482, %v701
        %v703 = vpop.f32.mrb[0].mxu0
        %v704 = vpop.f32.mrb[0].mxu0
        %v705 = vadd.f32 %v482, %v704
        %v706 = vpop.f32.mrb[0].mxu0
        %707 = vmatprep.mubr.bf16.mxu0 0
        %708 = vmatmul.mubr.bf16.gmra.mrb[0].mxu0 %v593
        %v709 = vpop.f32.mrb[0].mxu0
        %v710 = vadd.f32 %v482, %v709
        %v711 = vpop.f32.mrb[0].mxu0
        %v712 = vpop.f32.mrb[0].mxu0
        %v713 = vadd.f32 %v482, %v712
        %v714 = vpop.f32.mrb[0].mxu0
        %715 = vmatprep.mubr.bf16.mxu0 0
        %716 = vmatmul.mubr.bf16.gmra.mrb[0].mxu0 %v596
        %v717 = vpop.f32.mrb[0].mxu0
        %v718 = vadd.f32 %v482, %v717
        %v719 = vpop.f32.mrb[0].mxu0
        %v720 = vpop.f32.mrb[0].mxu0
        %v721 = vadd.f32 %v482, %v720
        %v722 = vpop.f32.mrb[0].mxu0
        %723 = vmatprep.mubr.bf16.mxu0 0
        %724 = vmatmul.mubr.bf16.gmra.mrb[0].mxu0 %v599
        %v725 = vpop.f32.mrb[0].mxu0
        %v726 = vadd.f32 %v482, %v725
        %v727 = vpop.f32.mrb[0].mxu0
        %v728 = vpop.f32.mrb[0].mxu0
        %v729 = vadd.f32 %v482, %v728
        %v730 = vpop.f32.mrb[0].mxu0
        %731 = vmatprep.mubr.bf16.mxu0 0
        %732 = vmatmul.mubr.bf16.gmra.mrb[0].mxu0 %v602
        %v733 = vpop.f32.mrb[0].mxu0
        %v734 = vadd.f32 %v482, %v733
        %v735 = vpop.f32.mrb[0].mxu0
        %v736 = vpop.f32.mrb[0].mxu0
        %v737 = vadd.f32 %v482, %v736
        %v738 = vpop.f32.mrb[0].mxu0
        %739 = vmatprep.mubr.bf16.mxu0 0
        %740 = vmatmul.mubr.bf16.gmra.mrb[0].mxu0 %v605
        %v741 = vpop.f32.mrb[0].mxu0
        %v742 = vadd.f32 %v482, %v741
        %v743 = vpop.f32.mrb[0].mxu0
        %v744 = vpop.f32.mrb[0].mxu0
        %v745 = vadd.f32 %v482, %v744
        %v746 = vpop.f32.mrb[0].mxu0
        %747 = vmatprep.mubr.bf16.mxu0 0
        %748 = vmatmul.mubr.bf16.gmra.mrb[0].mxu0 %v608
        %v749 = vpop.f32.mrb[0].mxu0
        %v750 = vadd.f32 %v482, %v749
        %v751 = vpop.f32.mrb[0].mxu0
        %v752 = vpop.f32.mrb[0].mxu0
        %v753 = vadd.f32 %v482, %v752
        %v754 = vpop.f32.mrb[0].mxu0
        %755 = vmatprep.mubr.bf16.mxu0 0
        %756 = vmatmul.mubr.bf16.gmra.mrb[0].mxu0 %v611
        %v757 = vpop.f32.mrb[0].mxu0
        %v758 = vadd.f32 %v482, %v757
        %v759 = vpop.f32.mrb[0].mxu0
        %v760 = vpop.f32.mrb[0].mxu0
        %v761 = vadd.f32 %v482, %v760
        %v762 = vpop.f32.mrb[0].mxu0
        %763 = vmatprep.mubr.bf16.mxu0 0
        %764 = vmatmul.mubr.bf16.gmra.mrb[0].mxu0 %v614
        %v765 = vpop.f32.mrb[0].mxu0
        %v766 = vadd.f32 %v482, %v765
        %v767 = vpop.f32.mrb[0].mxu0
        %v768 = vpop.f32.mrb[0].mxu0
        %v769 = vadd.f32 %v482, %v768
        %v770 = vpop.f32.mrb[0].mxu0
        %771 = vmatprep.mubr.bf16.mxu0 0
        %772 = vmatmul.mubr.bf16.gmra.mrb[0].mxu0 %v617
        %v773 = vpop.f32.mrb[0].mxu0
        %v774 = vadd.f32 %v482, %v773
        %v775 = vpop.f32.mrb[0].mxu0
        %v776 = vpop.f32.mrb[0].mxu0
        %v777 = vadd.f32 %v482, %v776
        %v778 = vpop.f32.mrb[0].mxu0
        %779 = vdwg.mxu0
        %v780 = vmax.f32 %v654, 0.0
        %v781 = vmax.f32 %v657, 0.0
        %v782 = vmax.f32 %v662, 0.0
        %v783 = vmax.f32 %v665, 0.0
        %v784 = vmax.f32 %v670, 0.0
        %v785 = vmax.f32 %v673, 0.0
        %v786 = vmax.f32 %v678, 0.0
        %v787 = vmax.f32 %v681, 0.0
        %v788 = vmax.f32 %v686, 0.0
        %v789 = vmax.f32 %v689, 0.0
        %v790 = vmax.f32 %v694, 0.0
        %v791 = vmax.f32 %v697, 0.0
        %v792 = vmax.f32 %v702, 0.0
        %v793 = vmax.f32 %v705, 0.0
        %v794 = vmax.f32 %v710, 0.0
        %v795 = vmax.f32 %v713, 0.0
        %v796 = vmax.f32 %v718, 0.0
        %v797 = vmax.f32 %v721, 0.0
        %v798 = vmax.f32 %v726, 0.0
        %v799 = vmax.f32 %v729, 0.0
        %v800 = vmax.f32 %v734, 0.0
        %v801 = vmax.f32 %v737, 0.0
        %v802 = vmax.f32 %v742, 0.0
        %v803 = vmax.f32 %v745, 0.0
        %v804 = vmax.f32 %v750, 0.0
        %v805 = vmax.f32 %v753, 0.0
        %v806 = vmax.f32 %v758, 0.0
        %v807 = vmax.f32 %v761, 0.0
        %v808 = vmax.f32 %v766, 0.0
        %v809 = vmax.f32 %v769, 0.0
        %v810 = vmax.f32 %v774, 0.0
        %v811 = vmax.f32 %v777, 0.0
        %v812 = vpack.c.bf16 %v781, %v780
        %v813 = vpack.c.bf16 %v783, %v782
        %v814 = vpack.c.bf16 %v785, %v784
        %v815 = vpack.c.bf16 %v787, %v786
        %v816 = vpack.c.bf16 %v789, %v788
        %v817 = vpack.c.bf16 %v791, %v790
        %v818 = vpack.c.bf16 %v793, %v792
        %v819 = vpack.c.bf16 %v795, %v794
        %v820 = vpack.c.bf16 %v797, %v796
        %v821 = vpack.c.bf16 %v799, %v798
        %v822 = vpack.c.bf16 %v801, %v800
        %v823 = vpack.c.bf16 %v803, %v802
        %v824 = vpack.c.bf16 %v805, %v804
        %v825 = vpack.c.bf16 %v807, %v806
        %v826 = vpack.c.bf16 %v809, %v808
        %v827 = vpack.c.bf16 %v811, %v810
        %v828 = vld [vmem:[%s3] sm:$0xf]
        %v829 = vld [vmem:[%s3 + $0x4] sm:$0xf]
        %v830 = vld [vmem:[%s3 + $0x8] sm:$0xf]
        %v831 = vld [vmem:[%s3 + $0xc] sm:$0xf]
        %v832 = vld [vmem:[%s4] sm:$0x1]
        %v834 = vlaneseq
        %v835 = vshrl.u32 %v834, 7
        %v836 = vsub.s32 0, %v835
        %v837 = vrot.slane %v832, %v836
        %v843 = vunpack.c.l.b16 %v828
        %v844 = vunpack.c.l.b16 %v829
        %v845 = vunpack.c.l.b16 %v830
        %v846 = vunpack.c.l.b16 %v831
        %v847 = vpack.c.b16 %v844, %v843
        %v848 = vpack.c.b16 %v846, %v845
        %vm851 = vcmask 261120
        %v853 = vsel %vm851, %v812, 0
        %v856 = vsel %vm851, %v813, 0
        %v859 = vsel %vm851, %v814, 0
        %v862 = vsel %vm851, %v815, 0
        %v865 = vsel %vm851, %v816, 0
        %v868 = vsel %vm851, %v817, 0
        %v871 = vsel %vm851, %v818, 0
        %v874 = vsel %vm851, %v819, 0
        %v877 = vsel %vm851, %v820, 0
        %v880 = vsel %vm851, %v821, 0
        %v883 = vsel %vm851, %v822, 0
        %v886 = vsel %vm851, %v823, 0
        %v889 = vsel %vm851, %v824, 0
        %v892 = vsel %vm851, %v825, 0
        %v895 = vsel %vm851, %v826, 0
        %v898 = vsel %vm851, %v827, 0
        %900 = vmatprep.subr.bf16.mxu0 0
        %901 = vmatpush1.bf16.msra.mxu0 %v847
        %902 = vmatprep.subr.bf16.mxu0 0
        %903 = vmatpush1.bf16.msra.mxu0 %v848
        %904 = vmatprep.subr.bf16.mxu0 0
        %905 = vmatpush1.bf16.msra.mxu0 0
        %906 = vmatprep.subr.bf16.mxu0 0
        %907 = vmatpush1.bf16.msra.mxu0 0
        %908 = vmatprep.subr.bf16.mxu0 0
        %909 = vmatpush1.bf16.msra.mxu0 0
        %910 = vmatprep.subr.bf16.mxu0 0
        %911 = vmatpush1.bf16.msra.mxu0 0
        %912 = vmatprep.subr.bf16.mxu0 0
        %913 = vmatpush1.bf16.msra.mxu0 0
        %914 = vmatprep.subr.bf16.mxu0 0
        %915 = vmatpush1.bf16.msra.mxu0 0
        %916 = vmatprep.subr.bf16.mxu0 0
        %917 = vmatpush1.bf16.msra.mxu0 0
        %918 = vmatprep.subr.bf16.mxu0 0
        %919 = vmatpush1.bf16.msra.mxu0 0
        %920 = vmatprep.subr.bf16.mxu0 0
        %921 = vmatpush1.bf16.msra.mxu0 0
        %922 = vmatprep.subr.bf16.mxu0 0
        %923 = vmatpush1.bf16.msra.mxu0 0
        %924 = vmatprep.subr.bf16.mxu0 0
        %925 = vmatpush1.bf16.msra.mxu0 0
        %926 = vmatprep.subr.bf16.mxu0 0
        %927 = vmatpush1.bf16.msra.mxu0 0
        %928 = vmatprep.subr.bf16.mxu0 0
        %929 = vmatpush1.bf16.msra.mxu0 0
        %930 = vmatprep.subr.bf16.mxu0 0
        %931 = vmatpush1.bf16.msra.mxu0 0
        %932 = vmatprep.mubr.bf16.mxu0 0
        %933 = vmatmul.mubr.bf16.gmra.mrb[0].mxu0 %v853
        %v934 = vpop.f32.mrb[0].mxu0
        %v935 = vadd.f32 %v837, %v934
        %v936 = vpop.f32.mrb[0].mxu0
        %v937 = vpop.f32.mrb[0].mxu0
        %v938 = vadd.f32 %v837, %v937
        %v939 = vpop.f32.mrb[0].mxu0
        %940 = vmatprep.mubr.bf16.mxu0 0
        %941 = vmatmul.mubr.bf16.gmra.mrb[0].mxu0 %v856
        %v942 = vpop.f32.mrb[0].mxu0
        %v943 = vadd.f32 %v837, %v942
        %v944 = vpop.f32.mrb[0].mxu0
        %v945 = vpop.f32.mrb[0].mxu0
        %v946 = vadd.f32 %v837, %v945
        %v947 = vpop.f32.mrb[0].mxu0
        %948 = vmatprep.mubr.bf16.mxu0 0
        %949 = vmatmul.mubr.bf16.gmra.mrb[0].mxu0 %v859
        %v950 = vpop.f32.mrb[0].mxu0
        %v951 = vadd.f32 %v837, %v950
        %v952 = vpop.f32.mrb[0].mxu0
        %v953 = vpop.f32.mrb[0].mxu0
        %v954 = vadd.f32 %v837, %v953
        %v955 = vpop.f32.mrb[0].mxu0
        %956 = vmatprep.mubr.bf16.mxu0 0
        %957 = vmatmul.mubr.bf16.gmra.mrb[0].mxu0 %v862
        %v958 = vpop.f32.mrb[0].mxu0
        %v959 = vadd.f32 %v837, %v958
        %v960 = vpop.f32.mrb[0].mxu0
        %v961 = vpop.f32.mrb[0].mxu0
        %v962 = vadd.f32 %v837, %v961
        %v963 = vpop.f32.mrb[0].mxu0
        %964 = vmatprep.mubr.bf16.mxu0 0
        %965 = vmatmul.mubr.bf16.gmra.mrb[0].mxu0 %v865
        %v966 = vpop.f32.mrb[0].mxu0
        %v967 = vadd.f32 %v837, %v966
        %v968 = vpop.f32.mrb[0].mxu0
        %v969 = vpop.f32.mrb[0].mxu0
        %v970 = vadd.f32 %v837, %v969
        %v971 = vpop.f32.mrb[0].mxu0
        %972 = vmatprep.mubr.bf16.mxu0 0
        %973 = vmatmul.mubr.bf16.gmra.mrb[0].mxu0 %v868
        %v974 = vpop.f32.mrb[0].mxu0
        %v975 = vadd.f32 %v837, %v974
        %v976 = vpop.f32.mrb[0].mxu0
        %v977 = vpop.f32.mrb[0].mxu0
        %v978 = vadd.f32 %v837, %v977
        %v979 = vpop.f32.mrb[0].mxu0
        %980 = vmatprep.mubr.bf16.mxu0 0
        %981 = vmatmul.mubr.bf16.gmra.mrb[0].mxu0 %v871
        %v982 = vpop.f32.mrb[0].mxu0
        %v983 = vadd.f32 %v837, %v982
        %v984 = vpop.f32.mrb[0].mxu0
        %v985 = vpop.f32.mrb[0].mxu0
        %v986 = vadd.f32 %v837, %v985
        %v987 = vpop.f32.mrb[0].mxu0
        %988 = vmatprep.mubr.bf16.mxu0 0
        %989 = vmatmul.mubr.bf16.gmra.mrb[0].mxu0 %v874
        %v990 = vpop.f32.mrb[0].mxu0
        %v991 = vadd.f32 %v837, %v990
        %v992 = vpop.f32.mrb[0].mxu0
        %v993 = vpop.f32.mrb[0].mxu0
        %v994 = vadd.f32 %v837, %v993
        %v995 = vpop.f32.mrb[0].mxu0
        %996 = vmatprep.mubr.bf16.mxu0 0
        %997 = vmatmul.mubr.bf16.gmra.mrb[0].mxu0 %v877
        %v998 = vpop.f32.mrb[0].mxu0
        %v999 = vadd.f32 %v837, %v998
        %v1000 = vpop.f32.mrb[0].mxu0
        %v1001 = vpop.f32.mrb[0].mxu0
        %v1002 = vadd.f32 %v837, %v1001
        %v1003 = vpop.f32.mrb[0].mxu0
        %1004 = vmatprep.mubr.bf16.mxu0 0
        %1005 = vmatmul.mubr.bf16.gmra.mrb[0].mxu0 %v880
        %v1006 = vpop.f32.mrb[0].mxu0
        %v1007 = vadd.f32 %v837, %v1006
        %v1008 = vpop.f32.mrb[0].mxu0
        %v1009 = vpop.f32.mrb[0].mxu0
        %v1010 = vadd.f32 %v837, %v1009
        %v1011 = vpop.f32.mrb[0].mxu0
        %1012 = vmatprep.mubr.bf16.mxu0 0
        %1013 = vmatmul.mubr.bf16.gmra.mrb[0].mxu0 %v883
        %v1014 = vpop.f32.mrb[0].mxu0
        %v1015 = vadd.f32 %v837, %v1014
        %v1016 = vpop.f32.mrb[0].mxu0
        %v1017 = vpop.f32.mrb[0].mxu0
        %v1018 = vadd.f32 %v837, %v1017
        %v1019 = vpop.f32.mrb[0].mxu0
        %1020 = vmatprep.mubr.bf16.mxu0 0
        %1021 = vmatmul.mubr.bf16.gmra.mrb[0].mxu0 %v886
        %v1022 = vpop.f32.mrb[0].mxu0
        %v1023 = vadd.f32 %v837, %v1022
        %v1024 = vpop.f32.mrb[0].mxu0
        %v1025 = vpop.f32.mrb[0].mxu0
        %v1026 = vadd.f32 %v837, %v1025
        %v1027 = vpop.f32.mrb[0].mxu0
        %1028 = vmatprep.mubr.bf16.mxu0 0
        %1029 = vmatmul.mubr.bf16.gmra.mrb[0].mxu0 %v889
        %v1030 = vpop.f32.mrb[0].mxu0
        %v1031 = vadd.f32 %v837, %v1030
        %v1032 = vpop.f32.mrb[0].mxu0
        %v1033 = vpop.f32.mrb[0].mxu0
        %v1034 = vadd.f32 %v837, %v1033
        %v1035 = vpop.f32.mrb[0].mxu0
        %1036 = vmatprep.mubr.bf16.mxu0 0
        %1037 = vmatmul.mubr.bf16.gmra.mrb[0].mxu0 %v892
        %v1038 = vpop.f32.mrb[0].mxu0
        %v1039 = vadd.f32 %v837, %v1038
        %v1040 = vpop.f32.mrb[0].mxu0
        %v1041 = vpop.f32.mrb[0].mxu0
        %v1042 = vadd.f32 %v837, %v1041
        %v1043 = vpop.f32.mrb[0].mxu0
        %1044 = vmatprep.mubr.bf16.mxu0 0
        %1045 = vmatmul.mubr.bf16.gmra.mrb[0].mxu0 %v895
        %v1046 = vpop.f32.mrb[0].mxu0
        %v1047 = vadd.f32 %v837, %v1046
        %v1048 = vpop.f32.mrb[0].mxu0
        %v1049 = vpop.f32.mrb[0].mxu0
        %v1050 = vadd.f32 %v837, %v1049
        %v1051 = vpop.f32.mrb[0].mxu0
        %1052 = vmatprep.mubr.bf16.mxu0 0
        %1053 = vmatmul.mubr.bf16.gmra.mrb[0].mxu0 %v898
        %v1054 = vpop.f32.mrb[0].mxu0
        %v1055 = vadd.f32 %v837, %v1054
        %v1056 = vpop.f32.mrb[0].mxu0
        %v1057 = vpop.f32.mrb[0].mxu0
        %v1058 = vadd.f32 %v837, %v1057
        %v1059 = vpop.f32.mrb[0].mxu0
        %1060 = vdwg.mxu0
        %v1061 = vmax.f32 %v935, 0.0
        %v1062 = vmax.f32 %v938, 0.0
        %v1063 = vmax.f32 %v943, 0.0
        %v1064 = vmax.f32 %v946, 0.0
        %v1065 = vmax.f32 %v951, 0.0
        %v1066 = vmax.f32 %v954, 0.0
        %v1067 = vmax.f32 %v959, 0.0
        %v1068 = vmax.f32 %v962, 0.0
        %v1069 = vmax.f32 %v967, 0.0
        %v1070 = vmax.f32 %v970, 0.0
        %v1071 = vmax.f32 %v975, 0.0
        %v1072 = vmax.f32 %v978, 0.0
        %v1073 = vmax.f32 %v983, 0.0
        %v1074 = vmax.f32 %v986, 0.0
        %v1075 = vmax.f32 %v991, 0.0
        %v1076 = vmax.f32 %v994, 0.0
        %v1077 = vmax.f32 %v999, 0.0
        %v1078 = vmax.f32 %v1002, 0.0
        %v1079 = vmax.f32 %v1007, 0.0
        %v1080 = vmax.f32 %v1010, 0.0
        %v1081 = vmax.f32 %v1015, 0.0
        %v1082 = vmax.f32 %v1018, 0.0
        %v1083 = vmax.f32 %v1023, 0.0
        %v1084 = vmax.f32 %v1026, 0.0
        %v1085 = vmax.f32 %v1031, 0.0
        %v1086 = vmax.f32 %v1034, 0.0
        %v1087 = vmax.f32 %v1039, 0.0
        %v1088 = vmax.f32 %v1042, 0.0
        %v1089 = vmax.f32 %v1047, 0.0
        %v1090 = vmax.f32 %v1050, 0.0
        %v1091 = vmax.f32 %v1055, 0.0
        %v1092 = vmax.f32 %v1058, 0.0
        %v1093 = vpack.c.bf16 %v1062, %v1061
        %v1094 = vpack.c.bf16 %v1064, %v1063
        %v1095 = vpack.c.bf16 %v1066, %v1065
        %v1096 = vpack.c.bf16 %v1068, %v1067
        %v1097 = vpack.c.bf16 %v1070, %v1069
        %v1098 = vpack.c.bf16 %v1072, %v1071
        %v1099 = vpack.c.bf16 %v1074, %v1073
        %v1100 = vpack.c.bf16 %v1076, %v1075
        %v1101 = vpack.c.bf16 %v1078, %v1077
        %v1102 = vpack.c.bf16 %v1080, %v1079
        %v1103 = vpack.c.bf16 %v1082, %v1081
        %v1104 = vpack.c.bf16 %v1084, %v1083
        %v1105 = vpack.c.bf16 %v1086, %v1085
        %v1106 = vpack.c.bf16 %v1088, %v1087
        %v1107 = vpack.c.bf16 %v1090, %v1089
        %v1108 = vpack.c.bf16 %v1092, %v1091
        %v1109 = vld [vmem:[%s5] sm:$0xf]
        %v1110 = vld [vmem:[%s5 + $0x4] sm:$0xf]
        %v1111 = vld [vmem:[%s5 + $0x8] sm:$0xf]
        %v1112 = vld [vmem:[%s5 + $0xc] sm:$0xf]
        %v1113 = vld [vmem:[%s6] sm:$0x1]
        %v1115 = vlaneseq
        %v1116 = vshrl.u32 %v1115, 7
        %v1117 = vsub.s32 0, %v1116
        %v1118 = vrot.slane %v1113, %v1117
        %v1124 = vunpack.c.l.b16 %v1109
        %v1125 = vunpack.c.l.b16 %v1110
        %v1126 = vunpack.c.l.b16 %v1111
        %v1127 = vunpack.c.l.b16 %v1112
        %v1128 = vpack.c.b16 %v1125, %v1124
        %v1129 = vpack.c.b16 %v1127, %v1126
        %v1133 = vsel %vm851, %v1093, 0
        %v1136 = vsel %vm851, %v1094, 0
        %v1139 = vsel %vm851, %v1095, 0
        %v1142 = vsel %vm851, %v1096, 0
        %v1145 = vsel %vm851, %v1097, 0
        %v1148 = vsel %vm851, %v1098, 0
        %v1151 = vsel %vm851, %v1099, 0
        %v1154 = vsel %vm851, %v1100, 0
        %v1157 = vsel %vm851, %v1101, 0
        %v1160 = vsel %vm851, %v1102, 0
        %v1163 = vsel %vm851, %v1103, 0
        %v1166 = vsel %vm851, %v1104, 0
        %v1169 = vsel %vm851, %v1105, 0
        %v1172 = vsel %vm851, %v1106, 0
        %v1175 = vsel %vm851, %v1107, 0
        %v1178 = vsel %vm851, %v1108, 0
        %1180 = vmatprep.subr.bf16.mxu0 0
        %1181 = vmatpush1.bf16.msra.mxu0 %v1128
        %1182 = vmatprep.subr.bf16.mxu0 0
        %1183 = vmatpush1.bf16.msra.mxu0 %v1129
        %1184 = vmatprep.subr.bf16.mxu0 0
        %1185 = vmatpush1.bf16.msra.mxu0 0
        %1186 = vmatprep.subr.bf16.mxu0 0
        %1187 = vmatpush1.bf16.msra.mxu0 0
        %1188 = vmatprep.subr.bf16.mxu0 0
        %1189 = vmatpush1.bf16.msra.mxu0 0
        %1190 = vmatprep.subr.bf16.mxu0 0
        %1191 = vmatpush1.bf16.msra.mxu0 0
        %1192 = vmatprep.subr.bf16.mxu0 0
        %1193 = vmatpush1.bf16.msra.mxu0 0
        %1194 = vmatprep.subr.bf16.mxu0 0
        %1195 = vmatpush1.bf16.msra.mxu0 0
        %1196 = vmatprep.subr.bf16.mxu0 0
        %1197 = vmatpush1.bf16.msra.mxu0 0
        %1198 = vmatprep.subr.bf16.mxu0 0
        %1199 = vmatpush1.bf16.msra.mxu0 0
        %1200 = vmatprep.subr.bf16.mxu0 0
        %1201 = vmatpush1.bf16.msra.mxu0 0
        %1202 = vmatprep.subr.bf16.mxu0 0
        %1203 = vmatpush1.bf16.msra.mxu0 0
        %1204 = vmatprep.subr.bf16.mxu0 0
        %1205 = vmatpush1.bf16.msra.mxu0 0
        %1206 = vmatprep.subr.bf16.mxu0 0
        %1207 = vmatpush1.bf16.msra.mxu0 0
        %1208 = vmatprep.subr.bf16.mxu0 0
        %1209 = vmatpush1.bf16.msra.mxu0 0
        %1210 = vmatprep.subr.bf16.mxu0 0
        %1211 = vmatpush1.bf16.msra.mxu0 0
        %1212 = vmatprep.mubr.bf16.mxu0 0
        %1213 = vmatmul.mubr.bf16.gmra.mrb[0].mxu0 %v1133
        %v1214 = vpop.f32.mrb[0].mxu0
        %v1215 = vadd.f32 %v1118, %v1214
        %v1216 = vpop.f32.mrb[0].mxu0
        %v1217 = vpop.f32.mrb[0].mxu0
        %v1218 = vadd.f32 %v1118, %v1217
        %v1219 = vpop.f32.mrb[0].mxu0
        %1220 = vmatprep.mubr.bf16.mxu0 0
        %1221 = vmatmul.mubr.bf16.gmra.mrb[0].mxu0 %v1136
        %v1222 = vpop.f32.mrb[0].mxu0
        %v1223 = vadd.f32 %v1118, %v1222
        %v1224 = vpop.f32.mrb[0].mxu0
        %v1225 = vpop.f32.mrb[0].mxu0
        %v1226 = vadd.f32 %v1118, %v1225
        %v1227 = vpop.f32.mrb[0].mxu0
        %1228 = vmatprep.mubr.bf16.mxu0 0
        %1229 = vmatmul.mubr.bf16.gmra.mrb[0].mxu0 %v1139
        %v1230 = vpop.f32.mrb[0].mxu0
        %v1231 = vadd.f32 %v1118, %v1230
        %v1232 = vpop.f32.mrb[0].mxu0
        %v1233 = vpop.f32.mrb[0].mxu0
        %v1234 = vadd.f32 %v1118, %v1233
        %v1235 = vpop.f32.mrb[0].mxu0
        %1236 = vmatprep.mubr.bf16.mxu0 0
        %1237 = vmatmul.mubr.bf16.gmra.mrb[0].mxu0 %v1142
        %v1238 = vpop.f32.mrb[0].mxu0
        %v1239 = vadd.f32 %v1118, %v1238
        %v1240 = vpop.f32.mrb[0].mxu0
        %v1241 = vpop.f32.mrb[0].mxu0
        %v1242 = vadd.f32 %v1118, %v1241
        %v1243 = vpop.f32.mrb[0].mxu0
        %1244 = vmatprep.mubr.bf16.mxu0 0
        %1245 = vmatmul.mubr.bf16.gmra.mrb[0].mxu0 %v1145
        %v1246 = vpop.f32.mrb[0].mxu0
        %v1247 = vadd.f32 %v1118, %v1246
        %v1248 = vpop.f32.mrb[0].mxu0
        %v1249 = vpop.f32.mrb[0].mxu0
        %v1250 = vadd.f32 %v1118, %v1249
        %v1251 = vpop.f32.mrb[0].mxu0
        %1252 = vmatprep.mubr.bf16.mxu0 0
        %1253 = vmatmul.mubr.bf16.gmra.mrb[0].mxu0 %v1148
        %v1254 = vpop.f32.mrb[0].mxu0
        %v1255 = vadd.f32 %v1118, %v1254
        %v1256 = vpop.f32.mrb[0].mxu0
        %v1257 = vpop.f32.mrb[0].mxu0
        %v1258 = vadd.f32 %v1118, %v1257
        %v1259 = vpop.f32.mrb[0].mxu0
        %1260 = vmatprep.mubr.bf16.mxu0 0
        %1261 = vmatmul.mubr.bf16.gmra.mrb[0].mxu0 %v1151
        %v1262 = vpop.f32.mrb[0].mxu0
        %v1263 = vadd.f32 %v1118, %v1262
        %v1264 = vpop.f32.mrb[0].mxu0
        %v1265 = vpop.f32.mrb[0].mxu0
        %v1266 = vadd.f32 %v1118, %v1265
        %v1267 = vpop.f32.mrb[0].mxu0
        %1268 = vmatprep.mubr.bf16.mxu0 0
        %1269 = vmatmul.mubr.bf16.gmra.mrb[0].mxu0 %v1154
        %v1270 = vpop.f32.mrb[0].mxu0
        %v1271 = vadd.f32 %v1118, %v1270
        %v1272 = vpop.f32.mrb[0].mxu0
        %v1273 = vpop.f32.mrb[0].mxu0
        %v1274 = vadd.f32 %v1118, %v1273
        %v1275 = vpop.f32.mrb[0].mxu0
        %1276 = vmatprep.mubr.bf16.mxu0 0
        %1277 = vmatmul.mubr.bf16.gmra.mrb[0].mxu0 %v1157
        %v1278 = vpop.f32.mrb[0].mxu0
        %v1279 = vadd.f32 %v1118, %v1278
        %v1280 = vpop.f32.mrb[0].mxu0
        %v1281 = vpop.f32.mrb[0].mxu0
        %v1282 = vadd.f32 %v1118, %v1281
        %v1283 = vpop.f32.mrb[0].mxu0
        %1284 = vmatprep.mubr.bf16.mxu0 0
        %1285 = vmatmul.mubr.bf16.gmra.mrb[0].mxu0 %v1160
        %v1286 = vpop.f32.mrb[0].mxu0
        %v1287 = vadd.f32 %v1118, %v1286
        %v1288 = vpop.f32.mrb[0].mxu0
        %v1289 = vpop.f32.mrb[0].mxu0
        %v1290 = vadd.f32 %v1118, %v1289
        %v1291 = vpop.f32.mrb[0].mxu0
        %1292 = vmatprep.mubr.bf16.mxu0 0
        %1293 = vmatmul.mubr.bf16.gmra.mrb[0].mxu0 %v1163
        %v1294 = vpop.f32.mrb[0].mxu0
        %v1295 = vadd.f32 %v1118, %v1294
        %v1296 = vpop.f32.mrb[0].mxu0
        %v1297 = vpop.f32.mrb[0].mxu0
        %v1298 = vadd.f32 %v1118, %v1297
        %v1299 = vpop.f32.mrb[0].mxu0
        %1300 = vmatprep.mubr.bf16.mxu0 0
        %1301 = vmatmul.mubr.bf16.gmra.mrb[0].mxu0 %v1166
        %v1302 = vpop.f32.mrb[0].mxu0
        %v1303 = vadd.f32 %v1118, %v1302
        %v1304 = vpop.f32.mrb[0].mxu0
        %v1305 = vpop.f32.mrb[0].mxu0
        %v1306 = vadd.f32 %v1118, %v1305
        %v1307 = vpop.f32.mrb[0].mxu0
        %1308 = vmatprep.mubr.bf16.mxu0 0
        %1309 = vmatmul.mubr.bf16.gmra.mrb[0].mxu0 %v1169
        %v1310 = vpop.f32.mrb[0].mxu0
        %v1311 = vadd.f32 %v1118, %v1310
        %v1312 = vpop.f32.mrb[0].mxu0
        %v1313 = vpop.f32.mrb[0].mxu0
        %v1314 = vadd.f32 %v1118, %v1313
        %v1315 = vpop.f32.mrb[0].mxu0
        %1316 = vmatprep.mubr.bf16.mxu0 0
        %1317 = vmatmul.mubr.bf16.gmra.mrb[0].mxu0 %v1172
        %v1318 = vpop.f32.mrb[0].mxu0
        %v1319 = vadd.f32 %v1118, %v1318
        %v1320 = vpop.f32.mrb[0].mxu0
        %v1321 = vpop.f32.mrb[0].mxu0
        %v1322 = vadd.f32 %v1118, %v1321
        %v1323 = vpop.f32.mrb[0].mxu0
        %1324 = vmatprep.mubr.bf16.mxu0 0
        %1325 = vmatmul.mubr.bf16.gmra.mrb[0].mxu0 %v1175
        %v1326 = vpop.f32.mrb[0].mxu0
        %v1327 = vadd.f32 %v1118, %v1326
        %v1328 = vpop.f32.mrb[0].mxu0
        %v1329 = vpop.f32.mrb[0].mxu0
        %v1330 = vadd.f32 %v1118, %v1329
        %v1331 = vpop.f32.mrb[0].mxu0
        %1332 = vmatprep.mubr.bf16.mxu0 0
        %1333 = vmatmul.mubr.bf16.gmra.mrb[0].mxu0 %v1178
        %v1334 = vpop.f32.mrb[0].mxu0
        %v1335 = vadd.f32 %v1118, %v1334
        %v1336 = vpop.f32.mrb[0].mxu0
        %v1337 = vpop.f32.mrb[0].mxu0
        %v1338 = vadd.f32 %v1118, %v1337
        %v1339 = vpop.f32.mrb[0].mxu0
        %1340 = vdwg.mxu0
        %v1341 = vpack.c.bf16 %v1218, %v1215
        %v1342 = vpack.c.bf16 %v1226, %v1223
        %v1343 = vpack.c.bf16 %v1234, %v1231
        %v1344 = vpack.c.bf16 %v1242, %v1239
        %v1345 = vpack.c.bf16 %v1250, %v1247
        %v1346 = vpack.c.bf16 %v1258, %v1255
        %v1347 = vpack.c.bf16 %v1266, %v1263
        %v1348 = vpack.c.bf16 %v1274, %v1271
        %v1349 = vpack.c.bf16 %v1282, %v1279
        %v1350 = vpack.c.bf16 %v1290, %v1287
        %v1351 = vpack.c.bf16 %v1298, %v1295
        %v1352 = vpack.c.bf16 %v1306, %v1303
        %v1353 = vpack.c.bf16 %v1314, %v1311
        %v1354 = vpack.c.bf16 %v1322, %v1319
        %v1355 = vpack.c.bf16 %v1330, %v1327
        %v1356 = vpack.c.bf16 %v1338, %v1335
        %v1357 = vld [vmem:[%s7] sm:$0xf]
        %v1358 = vld [vmem:[%s7 + $0x4] sm:$0xf]
        %v1359 = vld [vmem:[%s7 + $0x8] sm:$0xf]
        %v1360 = vld [vmem:[%s7 + $0xc] sm:$0xf]
        %v1365 = vunpack.c.l.b16 %v1357
        %v1366 = vunpack.c.l.b16 %v1358
        %v1367 = vunpack.c.l.b16 %v1359
        %v1368 = vunpack.c.l.b16 %v1360
        %v1369 = vpack.c.b16 %v1366, %v1365
        %v1370 = vpack.c.b16 %v1368, %v1367
        %v1374 = vsel %vm851, %v1341, 0
        %v1377 = vsel %vm851, %v1342, 0
        %v1380 = vsel %vm851, %v1343, 0
        %v1383 = vsel %vm851, %v1344, 0
        %v1386 = vsel %vm851, %v1345, 0
        %v1389 = vsel %vm851, %v1346, 0
        %v1392 = vsel %vm851, %v1347, 0
        %v1395 = vsel %vm851, %v1348, 0
        %v1398 = vsel %vm851, %v1349, 0
        %v1401 = vsel %vm851, %v1350, 0
        %v1404 = vsel %vm851, %v1351, 0
        %v1407 = vsel %vm851, %v1352, 0
        %v1410 = vsel %vm851, %v1353, 0
        %v1413 = vsel %vm851, %v1354, 0
        %v1416 = vsel %vm851, %v1355, 0
        %v1419 = vsel %vm851, %v1356, 0
        %1421 = vmatprep.subr.bf16.mxu0 0
        %1422 = vmatpush1.bf16.msra.mxu0 %v1369
        %1423 = vmatprep.subr.bf16.mxu0 0
        %1424 = vmatpush1.bf16.msra.mxu0 %v1370
        %1425 = vmatprep.subr.bf16.mxu0 0
        %1426 = vmatpush1.bf16.msra.mxu0 0
        %1427 = vmatprep.subr.bf16.mxu0 0
        %1428 = vmatpush1.bf16.msra.mxu0 0
        %1429 = vmatprep.subr.bf16.mxu0 0
        %1430 = vmatpush1.bf16.msra.mxu0 0
        %1431 = vmatprep.subr.bf16.mxu0 0
        %1432 = vmatpush1.bf16.msra.mxu0 0
        %1433 = vmatprep.subr.bf16.mxu0 0
        %1434 = vmatpush1.bf16.msra.mxu0 0
        %1435 = vmatprep.subr.bf16.mxu0 0
        %1436 = vmatpush1.bf16.msra.mxu0 0
        %1437 = vmatprep.subr.bf16.mxu0 0
        %1438 = vmatpush1.bf16.msra.mxu0 0
        %1439 = vmatprep.subr.bf16.mxu0 0
        %1440 = vmatpush1.bf16.msra.mxu0 0
        %1441 = vmatprep.subr.bf16.mxu0 0
        %1442 = vmatpush1.bf16.msra.mxu0 0
        %1443 = vmatprep.subr.bf16.mxu0 0
        %1444 = vmatpush1.bf16.msra.mxu0 0
        %1445 = vmatprep.subr.bf16.mxu0 0
        %1446 = vmatpush1.bf16.msra.mxu0 0
        %1447 = vmatprep.subr.bf16.mxu0 0
        %1448 = vmatpush1.bf16.msra.mxu0 0
        %1449 = vmatprep.subr.bf16.mxu0 0
        %1450 = vmatpush1.bf16.msra.mxu0 0
        %1451 = vmatprep.subr.bf16.mxu0 0
        %1452 = vmatpush1.bf16.msra.mxu0 0
        %1453 = vmatprep.mubr.bf16.mxu0 0
        %1454 = vmatmul.mubr.bf16.gmra.mrb[0].mxu0 %v1374
        %v1455 = vpop.f32.mrb[0].mxu0
        %v1456 = vadd.f32 0.0, %v1455
        %v1457 = vpop.f32.mrb[0].mxu0
        %v1458 = vpop.f32.mrb[0].mxu0
        %v1459 = vadd.f32 0.0, %v1458
        %v1460 = vpop.f32.mrb[0].mxu0
        %1461 = vmatprep.mubr.bf16.mxu0 0
        %1462 = vmatmul.mubr.bf16.gmra.mrb[0].mxu0 %v1377
        %v1463 = vpop.f32.mrb[0].mxu0
        %v1464 = vadd.f32 0.0, %v1463
        %v1465 = vpop.f32.mrb[0].mxu0
        %v1466 = vpop.f32.mrb[0].mxu0
        %v1467 = vadd.f32 0.0, %v1466
        %v1468 = vpop.f32.mrb[0].mxu0
        %1469 = vmatprep.mubr.bf16.mxu0 0
        %1470 = vmatmul.mubr.bf16.gmra.mrb[0].mxu0 %v1380
        %v1471 = vpop.f32.mrb[0].mxu0
        %v1472 = vadd.f32 0.0, %v1471
        %v1473 = vpop.f32.mrb[0].mxu0
        %v1474 = vpop.f32.mrb[0].mxu0
        %v1475 = vadd.f32 0.0, %v1474
        %v1476 = vpop.f32.mrb[0].mxu0
        %1477 = vmatprep.mubr.bf16.mxu0 0
        %1478 = vmatmul.mubr.bf16.gmra.mrb[0].mxu0 %v1383
        %v1479 = vpop.f32.mrb[0].mxu0
        %v1480 = vadd.f32 0.0, %v1479
        %v1481 = vpop.f32.mrb[0].mxu0
        %v1482 = vpop.f32.mrb[0].mxu0
        %v1483 = vadd.f32 0.0, %v1482
        %v1484 = vpop.f32.mrb[0].mxu0
        %1485 = vmatprep.mubr.bf16.mxu0 0
        %1486 = vmatmul.mubr.bf16.gmra.mrb[0].mxu0 %v1386
        %v1487 = vpop.f32.mrb[0].mxu0
        %v1488 = vadd.f32 0.0, %v1487
        %v1489 = vpop.f32.mrb[0].mxu0
        %v1490 = vpop.f32.mrb[0].mxu0
        %v1491 = vadd.f32 0.0, %v1490
        %v1492 = vpop.f32.mrb[0].mxu0
        %1493 = vmatprep.mubr.bf16.mxu0 0
        %1494 = vmatmul.mubr.bf16.gmra.mrb[0].mxu0 %v1389
        %v1495 = vpop.f32.mrb[0].mxu0
        %v1496 = vadd.f32 0.0, %v1495
        %v1497 = vpop.f32.mrb[0].mxu0
        %v1498 = vpop.f32.mrb[0].mxu0
        %v1499 = vadd.f32 0.0, %v1498
        %v1500 = vpop.f32.mrb[0].mxu0
        %1501 = vmatprep.mubr.bf16.mxu0 0
        %1502 = vmatmul.mubr.bf16.gmra.mrb[0].mxu0 %v1392
        %v1503 = vpop.f32.mrb[0].mxu0
        %v1504 = vadd.f32 0.0, %v1503
        %v1505 = vpop.f32.mrb[0].mxu0
        %v1506 = vpop.f32.mrb[0].mxu0
        %v1507 = vadd.f32 0.0, %v1506
        %v1508 = vpop.f32.mrb[0].mxu0
        %1509 = vmatprep.mubr.bf16.mxu0 0
        %1510 = vmatmul.mubr.bf16.gmra.mrb[0].mxu0 %v1395
        %v1511 = vpop.f32.mrb[0].mxu0
        %v1512 = vadd.f32 0.0, %v1511
        %v1513 = vpop.f32.mrb[0].mxu0
        %v1514 = vpop.f32.mrb[0].mxu0
        %v1515 = vadd.f32 0.0, %v1514
        %v1516 = vpop.f32.mrb[0].mxu0
        %1517 = vmatprep.mubr.bf16.mxu0 0
        %1518 = vmatmul.mubr.bf16.gmra.mrb[0].mxu0 %v1398
        %v1519 = vpop.f32.mrb[0].mxu0
        %v1520 = vadd.f32 0.0, %v1519
        %v1521 = vpop.f32.mrb[0].mxu0
        %v1522 = vpop.f32.mrb[0].mxu0
        %v1523 = vadd.f32 0.0, %v1522
        %v1524 = vpop.f32.mrb[0].mxu0
        %1525 = vmatprep.mubr.bf16.mxu0 0
        %1526 = vmatmul.mubr.bf16.gmra.mrb[0].mxu0 %v1401
        %v1527 = vpop.f32.mrb[0].mxu0
        %v1528 = vadd.f32 0.0, %v1527
        %v1529 = vpop.f32.mrb[0].mxu0
        %v1530 = vpop.f32.mrb[0].mxu0
        %v1531 = vadd.f32 0.0, %v1530
        %v1532 = vpop.f32.mrb[0].mxu0
        %1533 = vmatprep.mubr.bf16.mxu0 0
        %1534 = vmatmul.mubr.bf16.gmra.mrb[0].mxu0 %v1404
        %v1535 = vpop.f32.mrb[0].mxu0
        %v1536 = vadd.f32 0.0, %v1535
        %v1537 = vpop.f32.mrb[0].mxu0
        %v1538 = vpop.f32.mrb[0].mxu0
        %v1539 = vadd.f32 0.0, %v1538
        %v1540 = vpop.f32.mrb[0].mxu0
        %1541 = vmatprep.mubr.bf16.mxu0 0
        %1542 = vmatmul.mubr.bf16.gmra.mrb[0].mxu0 %v1407
        %v1543 = vpop.f32.mrb[0].mxu0
        %v1544 = vadd.f32 0.0, %v1543
        %v1545 = vpop.f32.mrb[0].mxu0
        %v1546 = vpop.f32.mrb[0].mxu0
        %v1547 = vadd.f32 0.0, %v1546
        %v1548 = vpop.f32.mrb[0].mxu0
        %1549 = vmatprep.mubr.bf16.mxu0 0
        %1550 = vmatmul.mubr.bf16.gmra.mrb[0].mxu0 %v1410
        %v1551 = vpop.f32.mrb[0].mxu0
        %v1552 = vadd.f32 0.0, %v1551
        %v1553 = vpop.f32.mrb[0].mxu0
        %v1554 = vpop.f32.mrb[0].mxu0
        %v1555 = vadd.f32 0.0, %v1554
        %v1556 = vpop.f32.mrb[0].mxu0
        %1557 = vmatprep.mubr.bf16.mxu0 0
        %1558 = vmatmul.mubr.bf16.gmra.mrb[0].mxu0 %v1413
        %v1559 = vpop.f32.mrb[0].mxu0
        %v1560 = vadd.f32 0.0, %v1559
        %v1561 = vpop.f32.mrb[0].mxu0
        %v1562 = vpop.f32.mrb[0].mxu0
        %v1563 = vadd.f32 0.0, %v1562
        %v1564 = vpop.f32.mrb[0].mxu0
        %1565 = vmatprep.mubr.bf16.mxu0 0
        %1566 = vmatmul.mubr.bf16.gmra.mrb[0].mxu0 %v1416
        %v1567 = vpop.f32.mrb[0].mxu0
        %v1568 = vadd.f32 0.0, %v1567
        %v1569 = vpop.f32.mrb[0].mxu0
        %v1570 = vpop.f32.mrb[0].mxu0
        %v1571 = vadd.f32 0.0, %v1570
        %v1572 = vpop.f32.mrb[0].mxu0
        %1573 = vmatprep.mubr.bf16.mxu0 0
        %1574 = vmatmul.mubr.bf16.gmra.mrb[0].mxu0 %v1419
        %v1575 = vpop.f32.mrb[0].mxu0
        %v1576 = vadd.f32 0.0, %v1575
        %v1577 = vpop.f32.mrb[0].mxu0
        %v1578 = vpop.f32.mrb[0].mxu0
        %v1579 = vadd.f32 0.0, %v1578
        %v1580 = vpop.f32.mrb[0].mxu0
        %1581 = vdwg.mxu0
        %v1582 = vsub.f32 %v1215, %v1279
        %v1583 = vsub.f32 %v1218, %v1282
        %v1584 = vsub.f32 %v1223, %v1287
        %v1585 = vsub.f32 %v1226, %v1290
        %v1586 = vsub.f32 %v1231, %v1295
        %v1587 = vsub.f32 %v1234, %v1298
        %v1588 = vsub.f32 %v1239, %v1303
        %v1589 = vsub.f32 %v1242, %v1306
        %v1590 = vsub.f32 %v1247, %v1311
        %v1591 = vsub.f32 %v1250, %v1314
        %v1592 = vsub.f32 %v1255, %v1319
        %v1593 = vsub.f32 %v1258, %v1322
        %v1594 = vsub.f32 %v1263, %v1327
        %v1595 = vsub.f32 %v1266, %v1330
        %v1596 = vsub.f32 %v1271, %v1335
        %v1597 = vsub.f32 %v1274, %v1338
        %v1598 = vmul.f32 %v1456, %v1582
        %v1599 = vmul.f32 %v1459, %v1583
        %v1600 = vmul.f32 %v1464, %v1584
        %v1601 = vmul.f32 %v1467, %v1585
        %v1602 = vmul.f32 %v1472, %v1586
        %v1603 = vmul.f32 %v1475, %v1587
        %v1604 = vmul.f32 %v1480, %v1588
        %v1605 = vmul.f32 %v1483, %v1589
        %v1606 = vmul.f32 %v1488, %v1590
        %v1607 = vmul.f32 %v1491, %v1591
        %v1608 = vmul.f32 %v1496, %v1592
        %v1609 = vmul.f32 %v1499, %v1593
        %v1610 = vmul.f32 %v1504, %v1594
        %v1611 = vmul.f32 %v1507, %v1595
        %v1612 = vmul.f32 %v1512, %v1596
        %v1613 = vmul.f32 %v1515, %v1597
        %v1614 = vsel %vm851, %v1598, 0.0
        %1615 = vadd.xlane.f32.xlu0 %v1614
        %v1616 = vpop.xlane.xlu0 %1615
        %v1617 = vsel %vm851, %v1599, 0.0
        %1618 = vadd.xlane.f32.xlu0 %v1617
        %v1619 = vpop.xlane.xlu0 %1618
        %v1620 = vsel %vm851, %v1600, 0.0
        %1621 = vadd.xlane.f32.xlu0 %v1620
        %v1622 = vpop.xlane.xlu0 %1621
        %v1623 = vsel %vm851, %v1601, 0.0
        %1624 = vadd.xlane.f32.xlu0 %v1623
        %v1625 = vpop.xlane.xlu0 %1624
        %v1626 = vsel %vm851, %v1602, 0.0
        %1627 = vadd.xlane.f32.xlu0 %v1626
        %v1628 = vpop.xlane.xlu0 %1627
        %v1629 = vsel %vm851, %v1603, 0.0
        %1630 = vadd.xlane.f32.xlu0 %v1629
        %v1631 = vpop.xlane.xlu0 %1630
        %v1632 = vsel %vm851, %v1604, 0.0
        %1633 = vadd.xlane.f32.xlu0 %v1632
        %v1634 = vpop.xlane.xlu0 %1633
        %v1635 = vsel %vm851, %v1605, 0.0
        %1636 = vadd.xlane.f32.xlu0 %v1635
        %v1637 = vpop.xlane.xlu0 %1636
        %v1638 = vsel %vm851, %v1606, 0.0
        %1639 = vadd.xlane.f32.xlu0 %v1638
        %v1640 = vpop.xlane.xlu0 %1639
        %v1641 = vsel %vm851, %v1607, 0.0
        %1642 = vadd.xlane.f32.xlu0 %v1641
        %v1643 = vpop.xlane.xlu0 %1642
        %v1644 = vsel %vm851, %v1608, 0.0
        %1645 = vadd.xlane.f32.xlu0 %v1644
        %v1646 = vpop.xlane.xlu0 %1645
        %v1647 = vsel %vm851, %v1609, 0.0
        %1648 = vadd.xlane.f32.xlu0 %v1647
        %v1649 = vpop.xlane.xlu0 %1648
        %v1650 = vsel %vm851, %v1610, 0.0
        %1651 = vadd.xlane.f32.xlu0 %v1650
        %v1652 = vpop.xlane.xlu0 %1651
        %v1653 = vsel %vm851, %v1611, 0.0
        %1654 = vadd.xlane.f32.xlu0 %v1653
        %v1655 = vpop.xlane.xlu0 %1654
        %v1656 = vsel %vm851, %v1612, 0.0
        %1657 = vadd.xlane.f32.xlu0 %v1656
        %v1658 = vpop.xlane.xlu0 %1657
        %v1659 = vsel %vm851, %v1613, 0.0
        %1660 = vadd.xlane.f32.xlu0 %v1659
        %v1661 = vpop.xlane.xlu0 %1660
        %v1662 = vmul.f32 %v1520, %v1582
        %v1663 = vmul.f32 %v1523, %v1583
        %v1664 = vmul.f32 %v1528, %v1584
        %v1665 = vmul.f32 %v1531, %v1585
        %v1666 = vmul.f32 %v1536, %v1586
        %v1667 = vmul.f32 %v1539, %v1587
        %v1668 = vmul.f32 %v1544, %v1588
        %v1669 = vmul.f32 %v1547, %v1589
        %v1670 = vmul.f32 %v1552, %v1590
        %v1671 = vmul.f32 %v1555, %v1591
        %v1672 = vmul.f32 %v1560, %v1592
        %v1673 = vmul.f32 %v1563, %v1593
        %v1674 = vmul.f32 %v1568, %v1594
        %v1675 = vmul.f32 %v1571, %v1595
        %v1676 = vmul.f32 %v1576, %v1596
        %v1677 = vmul.f32 %v1579, %v1597
        %v1678 = vsel %vm851, %v1662, 0.0
        %1679 = vadd.xlane.f32.xlu0 %v1678
        %v1680 = vpop.xlane.xlu0 %1679
        %v1681 = vsel %vm851, %v1663, 0.0
        %1682 = vadd.xlane.f32.xlu0 %v1681
        %v1683 = vpop.xlane.xlu0 %1682
        %v1684 = vsel %vm851, %v1664, 0.0
        %1685 = vadd.xlane.f32.xlu0 %v1684
        %v1686 = vpop.xlane.xlu0 %1685
        %v1687 = vsel %vm851, %v1665, 0.0
        %1688 = vadd.xlane.f32.xlu0 %v1687
        %v1689 = vpop.xlane.xlu0 %1688
        %v1690 = vsel %vm851, %v1666, 0.0
        %1691 = vadd.xlane.f32.xlu0 %v1690
        %v1692 = vpop.xlane.xlu0 %1691
        %v1693 = vsel %vm851, %v1667, 0.0
        %1694 = vadd.xlane.f32.xlu0 %v1693
        %v1695 = vpop.xlane.xlu0 %1694
        %v1696 = vsel %vm851, %v1668, 0.0
        %1697 = vadd.xlane.f32.xlu0 %v1696
        %v1698 = vpop.xlane.xlu0 %1697
        %v1699 = vsel %vm851, %v1669, 0.0
        %1700 = vadd.xlane.f32.xlu0 %v1699
        %v1701 = vpop.xlane.xlu0 %1700
        %v1702 = vsel %vm851, %v1670, 0.0
        %1703 = vadd.xlane.f32.xlu0 %v1702
        %v1704 = vpop.xlane.xlu0 %1703
        %v1705 = vsel %vm851, %v1671, 0.0
        %1706 = vadd.xlane.f32.xlu0 %v1705
        %v1707 = vpop.xlane.xlu0 %1706
        %v1708 = vsel %vm851, %v1672, 0.0
        %1709 = vadd.xlane.f32.xlu0 %v1708
        %v1710 = vpop.xlane.xlu0 %1709
        %v1711 = vsel %vm851, %v1673, 0.0
        %1712 = vadd.xlane.f32.xlu0 %v1711
        %v1713 = vpop.xlane.xlu0 %1712
        %v1714 = vsel %vm851, %v1674, 0.0
        %1715 = vadd.xlane.f32.xlu0 %v1714
        %v1716 = vpop.xlane.xlu0 %1715
        %v1717 = vsel %vm851, %v1675, 0.0
        %1718 = vadd.xlane.f32.xlu0 %v1717
        %v1719 = vpop.xlane.xlu0 %1718
        %v1720 = vsel %vm851, %v1676, 0.0
        %1721 = vadd.xlane.f32.xlu0 %v1720
        %v1722 = vpop.xlane.xlu0 %1721
        %v1723 = vsel %vm851, %v1677, 0.0
        %1724 = vadd.xlane.f32.xlu0 %v1723
        %v1725 = vpop.xlane.xlu0 %1724
        %v1726 = vand.u32 2147483647, %v1616
        %v1727 = vand.u32 2147483647, %v1619
        %v1728 = vand.u32 2147483647, %v1622
        %v1729 = vand.u32 2147483647, %v1625
        %v1730 = vand.u32 2147483647, %v1628
        %v1731 = vand.u32 2147483647, %v1631
        %v1732 = vand.u32 2147483647, %v1634
        %v1733 = vand.u32 2147483647, %v1637
        %v1734 = vand.u32 2147483647, %v1640
        %v1735 = vand.u32 2147483647, %v1643
        %v1736 = vand.u32 2147483647, %v1646
        %v1737 = vand.u32 2147483647, %v1649
        %v1738 = vand.u32 2147483647, %v1652
        %v1739 = vand.u32 2147483647, %v1655
        %v1740 = vand.u32 2147483647, %v1658
        %v1741 = vand.u32 2147483647, %v1661
        %v1742 = vsub.f32 0.0, %v1726
        %v1743 = vsub.f32 0.0, %v1727
        %v1744 = vsub.f32 0.0, %v1728
        %v1745 = vsub.f32 0.0, %v1729
        %v1746 = vsub.f32 0.0, %v1730
        %v1747 = vsub.f32 0.0, %v1731
        %v1748 = vsub.f32 0.0, %v1732
        %v1749 = vsub.f32 0.0, %v1733
        %v1750 = vsub.f32 0.0, %v1734
        %v1751 = vsub.f32 0.0, %v1735
        %v1752 = vsub.f32 0.0, %v1736
        %v1753 = vsub.f32 0.0, %v1737
        %v1754 = vsub.f32 0.0, %v1738
        %v1755 = vsub.f32 0.0, %v1739
        %v1756 = vsub.f32 0.0, %v1740
        %v1757 = vsub.f32 0.0, %v1741
        %v1758 = vmul.f32 %v1742, 1.442695
        %v1759 = vpow.pop %v1758
        %v1760 = vmul.f32 %v1743, 1.442695
        %v1761 = vpow.pop %v1760
        %v1762 = vmul.f32 %v1744, 1.442695
        %v1763 = vpow.pop %v1762
        %v1764 = vmul.f32 %v1745, 1.442695
        %v1765 = vpow.pop %v1764
        %v1766 = vmul.f32 %v1746, 1.442695
        %v1767 = vpow.pop %v1766
        %v1768 = vmul.f32 %v1747, 1.442695
        %v1769 = vpow.pop %v1768
        %v1770 = vmul.f32 %v1748, 1.442695
        %v1771 = vpow.pop %v1770
        %v1772 = vmul.f32 %v1749, 1.442695
        %v1773 = vpow.pop %v1772
        %v1774 = vmul.f32 %v1750, 1.442695
        %v1775 = vpow.pop %v1774
        %v1776 = vmul.f32 %v1751, 1.442695
        %v1777 = vpow.pop %v1776
        %v1778 = vmul.f32 %v1752, 1.442695
        %v1779 = vpow.pop %v1778
        %v1780 = vmul.f32 %v1753, 1.442695
        %v1781 = vpow.pop %v1780
        %v1782 = vmul.f32 %v1754, 1.442695
        %v1783 = vpow.pop %v1782
        %v1784 = vmul.f32 %v1755, 1.442695
        %v1785 = vpow.pop %v1784
        %v1786 = vmul.f32 %v1756, 1.442695
        %v1787 = vpow.pop %v1786
        %v1788 = vmul.f32 %v1757, 1.442695
        %v1789 = vpow.pop %v1788
        %v1790 = vadd.f32 %v1759, 1.0
        %v1791 = vadd.f32 %v1761, 1.0
        %v1792 = vadd.f32 %v1763, 1.0
        %v1793 = vadd.f32 %v1765, 1.0
        %v1794 = vadd.f32 %v1767, 1.0
        %v1795 = vadd.f32 %v1769, 1.0
        %v1796 = vadd.f32 %v1771, 1.0
        %v1797 = vadd.f32 %v1773, 1.0
        %v1798 = vadd.f32 %v1775, 1.0
        %v1799 = vadd.f32 %v1777, 1.0
        %v1800 = vadd.f32 %v1779, 1.0
        %v1801 = vadd.f32 %v1781, 1.0
        %v1802 = vadd.f32 %v1783, 1.0
        %v1803 = vadd.f32 %v1785, 1.0
        %v1804 = vadd.f32 %v1787, 1.0
        %v1805 = vadd.f32 %v1789, 1.0
        %v1806 = vrcp.pop %v1790
        %v1807 = vrcp.pop %v1791
        %v1808 = vrcp.pop %v1792
        %v1809 = vrcp.pop %v1793
        %v1810 = vrcp.pop %v1794
        %v1811 = vrcp.pop %v1795
        %v1812 = vrcp.pop %v1796
        %v1813 = vrcp.pop %v1797
        %v1814 = vrcp.pop %v1798
        %v1815 = vrcp.pop %v1799
        %v1816 = vrcp.pop %v1800
        %v1817 = vrcp.pop %v1801
        %v1818 = vrcp.pop %v1802
        %v1819 = vrcp.pop %v1803
        %v1820 = vrcp.pop %v1804
        %v1821 = vrcp.pop %v1805
        %vm1822 = vcmp.gt.f32.partialorder %v1616, 0.0
        %vm1823 = vcmp.gt.f32.partialorder %v1619, 0.0
        %vm1824 = vcmp.gt.f32.partialorder %v1622, 0.0
        %vm1825 = vcmp.gt.f32.partialorder %v1625, 0.0
        %vm1826 = vcmp.gt.f32.partialorder %v1628, 0.0
        %vm1827 = vcmp.gt.f32.partialorder %v1631, 0.0
        %vm1828 = vcmp.gt.f32.partialorder %v1634, 0.0
        %vm1829 = vcmp.gt.f32.partialorder %v1637, 0.0
        %vm1830 = vcmp.gt.f32.partialorder %v1640, 0.0
        %vm1831 = vcmp.gt.f32.partialorder %v1643, 0.0
        %vm1832 = vcmp.gt.f32.partialorder %v1646, 0.0
        %vm1833 = vcmp.gt.f32.partialorder %v1649, 0.0
        %vm1834 = vcmp.gt.f32.partialorder %v1652, 0.0
        %vm1835 = vcmp.gt.f32.partialorder %v1655, 0.0
        %vm1836 = vcmp.gt.f32.partialorder %v1658, 0.0
        %vm1837 = vcmp.gt.f32.partialorder %v1661, 0.0
        %v1838 = vmul.f32 %v1759, %v1806
        %v1839 = vmul.f32 %v1761, %v1807
        %v1840 = vmul.f32 %v1763, %v1808
        %v1841 = vmul.f32 %v1765, %v1809
        %v1842 = vmul.f32 %v1767, %v1810
        %v1843 = vmul.f32 %v1769, %v1811
        %v1844 = vmul.f32 %v1771, %v1812
        %v1845 = vmul.f32 %v1773, %v1813
        %v1846 = vmul.f32 %v1775, %v1814
        %v1847 = vmul.f32 %v1777, %v1815
        %v1848 = vmul.f32 %v1779, %v1816
        %v1849 = vmul.f32 %v1781, %v1817
        %v1850 = vmul.f32 %v1783, %v1818
        %v1851 = vmul.f32 %v1785, %v1819
        %v1852 = vmul.f32 %v1787, %v1820
        %v1853 = vmul.f32 %v1789, %v1821
        %v1854 = vsel %vm1822, %v1838, %v1806
        %v1855 = vsel %vm1823, %v1839, %v1807
        %v1856 = vsel %vm1824, %v1840, %v1808
        %v1857 = vsel %vm1825, %v1841, %v1809
        %v1858 = vsel %vm1826, %v1842, %v1810
        %v1859 = vsel %vm1827, %v1843, %v1811
        %v1860 = vsel %vm1828, %v1844, %v1812
        %v1861 = vsel %vm1829, %v1845, %v1813
        %v1862 = vsel %vm1830, %v1846, %v1814
        %v1863 = vsel %vm1831, %v1847, %v1815
        %v1864 = vsel %vm1832, %v1848, %v1816
        %v1865 = vsel %vm1833, %v1849, %v1817
        %v1866 = vsel %vm1834, %v1850, %v1818
        %v1867 = vsel %vm1835, %v1851, %v1819
        %v1868 = vsel %vm1836, %v1852, %v1820
        %v1869 = vsel %vm1837, %v1853, %v1821
        %v1870 = vand.u32 2147483647, %v1680
        %v1871 = vand.u32 2147483647, %v1683
        %v1872 = vand.u32 2147483647, %v1686
        %v1873 = vand.u32 2147483647, %v1689
        %v1874 = vand.u32 2147483647, %v1692
        %v1875 = vand.u32 2147483647, %v1695
        %v1876 = vand.u32 2147483647, %v1698
        %v1877 = vand.u32 2147483647, %v1701
        %v1878 = vand.u32 2147483647, %v1704
        %v1879 = vand.u32 2147483647, %v1707
        %v1880 = vand.u32 2147483647, %v1710
        %v1881 = vand.u32 2147483647, %v1713
        %v1882 = vand.u32 2147483647, %v1716
        %v1883 = vand.u32 2147483647, %v1719
        %v1884 = vand.u32 2147483647, %v1722
        %v1885 = vand.u32 2147483647, %v1725
        %v1886 = vsub.f32 0.0, %v1870
        %v1887 = vsub.f32 0.0, %v1871
        %v1888 = vsub.f32 0.0, %v1872
        %v1889 = vsub.f32 0.0, %v1873
        %v1890 = vsub.f32 0.0, %v1874
        %v1891 = vsub.f32 0.0, %v1875
        %v1892 = vsub.f32 0.0, %v1876
        %v1893 = vsub.f32 0.0, %v1877
        %v1894 = vsub.f32 0.0, %v1878
        %v1895 = vsub.f32 0.0, %v1879
        %v1896 = vsub.f32 0.0, %v1880
        %v1897 = vsub.f32 0.0, %v1881
        %v1898 = vsub.f32 0.0, %v1882
        %v1899 = vsub.f32 0.0, %v1883
        %v1900 = vsub.f32 0.0, %v1884
        %v1901 = vsub.f32 0.0, %v1885
        %v1902 = vmul.f32 %v1886, 1.442695
        %v1903 = vpow.pop %v1902
        %v1904 = vmul.f32 %v1887, 1.442695
        %v1905 = vpow.pop %v1904
        %v1906 = vmul.f32 %v1888, 1.442695
        %v1907 = vpow.pop %v1906
        %v1908 = vmul.f32 %v1889, 1.442695
        %v1909 = vpow.pop %v1908
        %v1910 = vmul.f32 %v1890, 1.442695
        %v1911 = vpow.pop %v1910
        %v1912 = vmul.f32 %v1891, 1.442695
        %v1913 = vpow.pop %v1912
        %v1914 = vmul.f32 %v1892, 1.442695
        %v1915 = vpow.pop %v1914
        %v1916 = vmul.f32 %v1893, 1.442695
        %v1917 = vpow.pop %v1916
        %v1918 = vmul.f32 %v1894, 1.442695
        %v1919 = vpow.pop %v1918
        %v1920 = vmul.f32 %v1895, 1.442695
        %v1921 = vpow.pop %v1920
        %v1922 = vmul.f32 %v1896, 1.442695
        %v1923 = vpow.pop %v1922
        %v1924 = vmul.f32 %v1897, 1.442695
        %v1925 = vpow.pop %v1924
        %v1926 = vmul.f32 %v1898, 1.442695
        %v1927 = vpow.pop %v1926
        %v1928 = vmul.f32 %v1899, 1.442695
        %v1929 = vpow.pop %v1928
        %v1930 = vmul.f32 %v1900, 1.442695
        %v1931 = vpow.pop %v1930
        %v1932 = vmul.f32 %v1901, 1.442695
        %v1933 = vpow.pop %v1932
        %v1934 = vadd.f32 %v1903, 1.0
        %v1935 = vadd.f32 %v1905, 1.0
        %v1936 = vadd.f32 %v1907, 1.0
        %v1937 = vadd.f32 %v1909, 1.0
        %v1938 = vadd.f32 %v1911, 1.0
        %v1939 = vadd.f32 %v1913, 1.0
        %v1940 = vadd.f32 %v1915, 1.0
        %v1941 = vadd.f32 %v1917, 1.0
        %v1942 = vadd.f32 %v1919, 1.0
        %v1943 = vadd.f32 %v1921, 1.0
        %v1944 = vadd.f32 %v1923, 1.0
        %v1945 = vadd.f32 %v1925, 1.0
        %v1946 = vadd.f32 %v1927, 1.0
        %v1947 = vadd.f32 %v1929, 1.0
        %v1948 = vadd.f32 %v1931, 1.0
        %v1949 = vadd.f32 %v1933, 1.0
        %v1950 = vrcp.pop %v1934
        %v1951 = vrcp.pop %v1935
        %v1952 = vrcp.pop %v1936
        %v1953 = vrcp.pop %v1937
        %v1954 = vrcp.pop %v1938
        %v1955 = vrcp.pop %v1939
        %v1956 = vrcp.pop %v1940
        %v1957 = vrcp.pop %v1941
        %v1958 = vrcp.pop %v1942
        %v1959 = vrcp.pop %v1943
        %v1960 = vrcp.pop %v1944
        %v1961 = vrcp.pop %v1945
        %v1962 = vrcp.pop %v1946
        %v1963 = vrcp.pop %v1947
        %v1964 = vrcp.pop %v1948
        %v1965 = vrcp.pop %v1949
        %vm1966 = vcmp.gt.f32.partialorder %v1680, 0.0
        %vm1967 = vcmp.gt.f32.partialorder %v1683, 0.0
        %vm1968 = vcmp.gt.f32.partialorder %v1686, 0.0
        %vm1969 = vcmp.gt.f32.partialorder %v1689, 0.0
        %vm1970 = vcmp.gt.f32.partialorder %v1692, 0.0
        %vm1971 = vcmp.gt.f32.partialorder %v1695, 0.0
        %vm1972 = vcmp.gt.f32.partialorder %v1698, 0.0
        %vm1973 = vcmp.gt.f32.partialorder %v1701, 0.0
        %vm1974 = vcmp.gt.f32.partialorder %v1704, 0.0
        %vm1975 = vcmp.gt.f32.partialorder %v1707, 0.0
        %vm1976 = vcmp.gt.f32.partialorder %v1710, 0.0
        %vm1977 = vcmp.gt.f32.partialorder %v1713, 0.0
        %vm1978 = vcmp.gt.f32.partialorder %v1716, 0.0
        %vm1979 = vcmp.gt.f32.partialorder %v1719, 0.0
        %vm1980 = vcmp.gt.f32.partialorder %v1722, 0.0
        %vm1981 = vcmp.gt.f32.partialorder %v1725, 0.0
        %v1982 = vmul.f32 %v1903, %v1950
        %v1983 = vmul.f32 %v1905, %v1951
        %v1984 = vmul.f32 %v1907, %v1952
        %v1985 = vmul.f32 %v1909, %v1953
        %v1986 = vmul.f32 %v1911, %v1954
        %v1987 = vmul.f32 %v1913, %v1955
        %v1988 = vmul.f32 %v1915, %v1956
        %v1989 = vmul.f32 %v1917, %v1957
        %v1990 = vmul.f32 %v1919, %v1958
        %v1991 = vmul.f32 %v1921, %v1959
        %v1992 = vmul.f32 %v1923, %v1960
        %v1993 = vmul.f32 %v1925, %v1961
        %v1994 = vmul.f32 %v1927, %v1962
        %v1995 = vmul.f32 %v1929, %v1963
        %v1996 = vmul.f32 %v1931, %v1964
        %v1997 = vmul.f32 %v1933, %v1965
        %v1998 = vsel %vm1966, %v1982, %v1950
        %v1999 = vsel %vm1967, %v1983, %v1951
        %v2000 = vsel %vm1968, %v1984, %v1952
        %v2001 = vsel %vm1969, %v1985, %v1953
        %v2002 = vsel %vm1970, %v1986, %v1954
        %v2003 = vsel %vm1971, %v1987, %v1955
        %v2004 = vsel %vm1972, %v1988, %v1956
        %v2005 = vsel %vm1973, %v1989, %v1957
        %v2006 = vsel %vm1974, %v1990, %v1958
        %v2007 = vsel %vm1975, %v1991, %v1959
        %v2008 = vsel %vm1976, %v1992, %v1960
        %v2009 = vsel %vm1977, %v1993, %v1961
        %v2010 = vsel %vm1978, %v1994, %v1962
        %v2011 = vsel %vm1979, %v1995, %v1963
        %v2012 = vsel %vm1980, %v1996, %v1964
        %v2013 = vsel %vm1981, %v1997, %v1965
        %v2014 = vld [vmem:[%s8] sm:$0x1]
        %v2015 = vld [vmem:[%s9] sm:$0x1]
        %v2017 = vlaneseq
        %v2018 = vshrl.u32 %v2017, 7
        %v2019 = vsub.s32 0, %v2018
        %v2020 = vrot.slane %v2015, %v2019
        %v2022 = vmul.f32 %v1854, %v2020
        %v2023 = vmul.f32 %v1855, %v2020
        %v2024 = vmul.f32 %v1856, %v2020
        %v2025 = vmul.f32 %v1857, %v2020
        %v2026 = vmul.f32 %v1858, %v2020
        %v2027 = vmul.f32 %v1859, %v2020
        %v2028 = vmul.f32 %v1860, %v2020
        %v2029 = vmul.f32 %v1861, %v2020
        %v2030 = vmul.f32 %v1862, %v2020
        %v2031 = vmul.f32 %v1863, %v2020
        %v2032 = vmul.f32 %v1864, %v2020
        %v2033 = vmul.f32 %v1865, %v2020
        %v2034 = vmul.f32 %v1866, %v2020
        %v2035 = vmul.f32 %v1867, %v2020
        %v2036 = vmul.f32 %v1868, %v2020
        %v2037 = vmul.f32 %v1869, %v2020
        %v2039 = vlaneseq
        %v2040 = vshrl.u32 %v2039, 7
        %v2041 = vsub.s32 0, %v2040
        %v2042 = vrot.slane %v2014, %v2041
        %v2044 = vadd.f32 %v2042, %v2022
        %v2045 = vadd.f32 %v2042, %v2023
        %v2046 = vadd.f32 %v2042, %v2024
        %v2047 = vadd.f32 %v2042, %v2025
        %v2048 = vadd.f32 %v2042, %v2026
        %v2049 = vadd.f32 %v2042, %v2027
        %v2050 = vadd.f32 %v2042, %v2028
        %v2051 = vadd.f32 %v2042, %v2029
        %v2052 = vadd.f32 %v2042, %v2030
        %v2053 = vadd.f32 %v2042, %v2031
        %v2054 = vadd.f32 %v2042, %v2032
        %v2055 = vadd.f32 %v2042, %v2033
        %v2056 = vadd.f32 %v2042, %v2034
        %v2057 = vadd.f32 %v2042, %v2035
        %v2058 = vadd.f32 %v2042, %v2036
        %v2059 = vadd.f32 %v2042, %v2037
        %v2060 = vld [vmem:[%s10] sm:$0x1]
        %v2062 = vlaneseq
        %v2063 = vshrl.u32 %v2062, 7
        %v2064 = vsub.s32 0, %v2063
        %v2065 = vrot.slane %v2060, %v2064
        %v2067 = vmul.f32 %v1998, %v2065
        %v2068 = vmul.f32 %v1999, %v2065
        %v2069 = vmul.f32 %v2000, %v2065
        %v2070 = vmul.f32 %v2001, %v2065
        %v2071 = vmul.f32 %v2002, %v2065
        %v2072 = vmul.f32 %v2003, %v2065
        %v2073 = vmul.f32 %v2004, %v2065
        %v2074 = vmul.f32 %v2005, %v2065
        %v2075 = vmul.f32 %v2006, %v2065
        %v2076 = vmul.f32 %v2007, %v2065
        %v2077 = vmul.f32 %v2008, %v2065
        %v2078 = vmul.f32 %v2009, %v2065
        %v2079 = vmul.f32 %v2010, %v2065
        %v2080 = vmul.f32 %v2011, %v2065
        %v2081 = vmul.f32 %v2012, %v2065
        %v2082 = vmul.f32 %v2013, %v2065
        %v2083 = vadd.f32 %v2044, %v2067
        %v2084 = vadd.f32 %v2045, %v2068
        %v2085 = vadd.f32 %v2046, %v2069
        %v2086 = vadd.f32 %v2047, %v2070
        %v2087 = vadd.f32 %v2048, %v2071
        %v2088 = vadd.f32 %v2049, %v2072
        %v2089 = vadd.f32 %v2050, %v2073
        %v2090 = vadd.f32 %v2051, %v2074
        %v2091 = vadd.f32 %v2052, %v2075
        %v2092 = vadd.f32 %v2053, %v2076
        %v2093 = vadd.f32 %v2054, %v2077
        %v2094 = vadd.f32 %v2055, %v2078
        %v2095 = vadd.f32 %v2056, %v2079
        %v2096 = vadd.f32 %v2057, %v2080
        %v2097 = vadd.f32 %v2058, %v2081
        %v2098 = vadd.f32 %v2059, %v2082
        %v2099 = vmax.f32 %v2083, 0.0
        %v2100 = vmax.f32 %v2084, 0.0
        %v2101 = vmax.f32 %v2085, 0.0
        %v2102 = vmax.f32 %v2086, 0.0
        %v2103 = vmax.f32 %v2087, 0.0
        %v2104 = vmax.f32 %v2088, 0.0
        %v2105 = vmax.f32 %v2089, 0.0
        %v2106 = vmax.f32 %v2090, 0.0
        %v2107 = vmax.f32 %v2091, 0.0
        %v2108 = vmax.f32 %v2092, 0.0
        %v2109 = vmax.f32 %v2093, 0.0
        %v2110 = vmax.f32 %v2094, 0.0
        %v2111 = vmax.f32 %v2095, 0.0
        %v2112 = vmax.f32 %v2096, 0.0
        %v2113 = vmax.f32 %v2097, 0.0
        %v2114 = vmax.f32 %v2098, 0.0
        %v2115 = vld [vmem:[%s11] sm:$0x1]
        %v2116 = vpack.c.bf16 %v2100, %v2099
        %v2117 = vpack.c.bf16 %v2102, %v2101
        %v2118 = vpack.c.bf16 %v2104, %v2103
        %v2119 = vpack.c.bf16 %v2106, %v2105
        %v2120 = vpack.c.bf16 %v2108, %v2107
        %v2121 = vpack.c.bf16 %v2110, %v2109
        %v2122 = vpack.c.bf16 %v2112, %v2111
        %v2123 = vpack.c.bf16 %v2114, %v2113
        %v2124 = vld [vmem:[#allocation2] sm:$0x1]
        %2126 = vset.pattern.permute.xlu0 0
        %2127 = vperm.xlu0 %2126, %v2124
        %v2128 = vpop.permute.xlu0 %2127
        %v2130 = vlaneseq
        %v2131 = vshrl.u32 %v2130, 7
        %v2132 = vsub.s32 0, %v2131
        %v2133 = vrot.slane %v2128, %v2132
        %v2135 = vsel %vm851, %v2115, 0
        %v2138 = vsel %vm851, %v2116, 0
        %v2141 = vsel %vm851, %v2117, 0
        %v2144 = vsel %vm851, %v2118, 0
        %v2147 = vsel %vm851, %v2119, 0
        %v2150 = vsel %vm851, %v2120, 0
        %v2153 = vsel %vm851, %v2121, 0
        %v2156 = vsel %vm851, %v2122, 0
        %v2159 = vsel %vm851, %v2123, 0
        %2161 = vmatprep.subr.bf16.mxu0 0
        %2162 = vmatpush1.bf16.xpose.msra.mxu0 %v2138
        %2163 = vmatprep.subr.bf16.mxu0 0
        %2164 = vmatpush1.bf16.xpose.msra.mxu0 %v2141
        %2165 = vmatprep.subr.bf16.mxu0 0
        %2166 = vmatpush1.bf16.xpose.msra.mxu0 %v2144
        %2167 = vmatprep.subr.bf16.mxu0 0
        %2168 = vmatpush1.bf16.xpose.msra.mxu0 %v2147
        %2169 = vmatprep.subr.bf16.mxu0 0
        %2170 = vmatpush1.bf16.xpose.msra.mxu0 %v2150
        %2171 = vmatprep.subr.bf16.mxu0 0
        %2172 = vmatpush1.bf16.xpose.msra.mxu0 %v2153
        %2173 = vmatprep.subr.bf16.mxu0 0
        %2174 = vmatpush1.bf16.xpose.msra.mxu0 %v2156
        %2175 = vmatprep.subr.bf16.mxu0 0
        %2176 = vmatpush1.bf16.xpose.msra.mxu0 %v2159
        %2177 = vmatprep.subr.bf16.mxu0 0
        %2178 = vmatpush1.bf16.xpose.msra.mxu0 0
        %2179 = vmatprep.subr.bf16.mxu0 0
        %2180 = vmatpush1.bf16.xpose.msra.mxu0 0
        %2181 = vmatprep.subr.bf16.mxu0 0
        %2182 = vmatpush1.bf16.xpose.msra.mxu0 0
        %2183 = vmatprep.subr.bf16.mxu0 0
        %2184 = vmatpush1.bf16.xpose.msra.mxu0 0
        %2185 = vmatprep.subr.bf16.mxu0 0
        %2186 = vmatpush1.bf16.xpose.msra.mxu0 0
        %2187 = vmatprep.subr.bf16.mxu0 0
        %2188 = vmatpush1.bf16.xpose.msra.mxu0 0
        %2189 = vmatprep.subr.bf16.mxu0 0
        %2190 = vmatpush1.bf16.xpose.msra.mxu0 0
        %2191 = vmatprep.subr.bf16.mxu0 0
        %2192 = vmatpush1.bf16.xpose.msra.mxu0 0
        %2193 = vmatprep.mubr.bf16.mxu0 0
        %2194 = vmatmul.mubr.bf16.gmra.mrb[0].mxu0 %v2135
        %v2195 = vpop.f32.mrb[0].mxu0
        %v2196 = vadd.f32 %v2133, %v2195
        %v2197 = vpop.f32.mrb[0].mxu0
        %v2198 = vpop.f32.mrb[0].mxu0
        %v2199 = vpop.f32.mrb[0].mxu0
        %2200 = vdwg.mxu0
        %v2201 = vsub.f32 0.0, %v2196
        %v2202 = vand.u32 2147483647, %v2201
        %v2203 = vsub.f32 0.0, %v2202
        %v2204 = vmul.f32 %v2203, 1.442695
        %v2205 = vpow.pop %v2204
        %v2206 = vadd.f32 %v2205, 1.0
        %v2207 = vrcp.pop %v2206
        %vm2208 = vcmp.gt.f32.partialorder %v2201, 0.0
        %v2209 = vmul.f32 %v2205, %v2207
        %v2210 = vsel %vm2208, %v2209, %v2207
        %2211 = vst [vmem:[%s435] sm:$0x1] %v2210
        %s2212 = sand.u32 %s315, 1
        %s2213 = scalar_lea.sflag [#allocation4], %s2212
        %s2214 = sand.u32 %s315, 1
        %s2215 = scalar_lea.vmem [#allocation3], %s2214
        // Predicated region
        $region73: #{tpu_custom_call.1} parent=71 // pred_check
          %p2216 = pneg %p325
        $region74: #{tpu_custom_call.1} parent=71 // pred_check_branch
          %2218 = sbr.rel (%p2216) target = $region76
        $region75: #{tpu_custom_call.1} parent=71 // pred_region
          %s2220 = ssub.s32 16, 16
          %2221 = vsyncadd %s2213, %s2220
          %s2222 = smul.addr %s29, 16
          %s2223 = scalar_lea.hbm %s13, %s2222
          %s2225 = sshll.u32 %s2215, 4
          %s2226 = int_to_ptr.vmem [resolvable:$true] %s2225
          %2228 = dma.vmem_to_hbm [thread:$0]  %s2226, 16, %s2223, %s2213
        $region76: #{tpu_custom_call.1} parent=71 // pred_fallthru
          _
      $region72: #{tpu_custom_call.1} parent=5 // pred_fallthru
        _
      %p2229 = scmp.le.s32.totalorder 2, %s24
      // Predicated region
      $region77: #{tpu_custom_call.1} parent=5 // pred_check
        %p2230 = pneg %p2229
      $region78: #{tpu_custom_call.1} parent=5 // pred_check_branch
        %2232 = sbr.rel (%p2230) target = $region80
      $region79: #{tpu_custom_call.1} parent=5 // pred_region
        %s2233 = ssub.s32 %s24, 2
        // Predicated region
        $region81: #{tpu_custom_call.1} parent=79 // pred_check
          %p2234 = pneg %p331
        $region82: #{tpu_custom_call.1} parent=79 // pred_check_branch
          %2236 = sbr.rel (%p2234) target = $region84
        $region83: #{tpu_custom_call.1} parent=79 // pred_region
          %s2237 = sand.u32 %s316, 1
          %s2238 = scalar_lea.sflag [#allocation4], %s2237
          %s2239 = sand.u32 %s316, 1
          %s2240 = scalar_lea.vmem [#allocation3], %s2239
          %2241 = dma.done %s2238, 16
        $region84: #{tpu_custom_call.1} parent=79 // pred_fallthru
          _
      $region80: #{tpu_custom_call.1} parent=5 // pred_fallthru
        _
    $region6: #{tpu_custom_call.1} parent=1 // loop_footer
      %s28 = sadd.s32 1, %s24
    $region7: #{tpu_custom_call.1} parent=1 // loop_footer_branch
      %23 = sbr.rel target = $region3
    $region8: #{tpu_custom_call.1} parent=1 // loop_exit
      _
    %2242 = vsyncpa [#allocation4], 1
    %s2243 = scalar_lea.sflag [#allocation4], 1
    %2244 = vsyncpa %s2243, 1

</llo_original>
